<compile_context>
chip_gen: v7x
topology: tpu7x:2x2x1
jax: 0.10.0
libtpu: 0.0.40
codegen_flags: <defaults>
</compile_context>

<pallas_src>
import jax
import jax.numpy as jnp
import numpy as np
from jax.experimental import pallas as pl
from jax.experimental.pallas import tpu as pltpu


def encoder_kernel(emb_ref,            # [T*B, E]   bf16
                   wih_ref,            # [E, 6H]    bf16   cols = [r_f,z_f,n_f,r_b,z_b,n_b]
                   bih_ref,            # [1, 6H]    f32
                   whh_ref,            # [H, 6H]    bf16   same column layout
                   bhh_ref,            # [1, 6H]    f32
                   wfc_ref,            # [2H, D]    bf16
                   bfc_ref,            # [1, D]     f32
                   out_f_ref,          # [T, B, H]  f32  forward hidden per step
                   out_b_ref,          # [T, B, H]  f32  backward hidden per step
                   s_ref,              # [B, D]     f32
                   gi_ref):            # scratch VMEM [T*B, 6H] f32
    T, B, H = out_f_ref.shape
    G = 3 * H

    # ---- One big input-projection GEMM (all timesteps, both directions, all gates). ----
    # Removes 2 of the 4 per-step matmuls from the serial chain; bih folded in here.
    gi_ref[...] = jnp.dot(emb_ref[...], wih_ref[...],
                          preferred_element_type=jnp.float32) + bih_ref[...]

    whh = whh_ref[...]     # hoisted loads (loop-invariant)
    bhh = bhh_ref[...]

    h0 = jnp.zeros((B, H), jnp.float32)

    def step(t, carry):
        hf, hb = carry                                           # [B, H] f32, live in vregs

        gi_rows_f = gi_ref[pl.ds(t * B, B), :]                   # fwd uses time t
        gi_rows_b = gi_ref[pl.ds((T - 1 - t) * B, B), :]         # bwd uses time T-1-t
        gi_f = gi_rows_f[:, :G]
        gi_b = gi_rows_b[:, G:]

        # Fused recurrence matmul: [hf; hb] ([2B,H]) @ [Whh_f | Whh_b] ([H,6H]) -> [2B,6H]
        h_cat = jnp.concatenate([hf, hb], axis=0).astype(jnp.bfloat16)
        gh = jnp.dot(h_cat, whh, preferred_element_type=jnp.float32) + bhh
        gh_f = gh[:B, :G]          # fwd rows, fwd columns
        gh_b = gh[B:, G:]          # bwd rows, bwd columns (cross terms are wasted/free)

        def gru(gi_d, gh_d, h_prev):
            r = jax.nn.sigmoid(gi_d[:, :H] + gh_d[:, :H])
            z = jax.nn.sigmoid(gi_d[:, H:2 * H] + gh_d[:, H:2 * H])
            n = jnp.tanh(gi_d[:, 2 * H:] + r * gh_d[:, 2 * H:])   # bhh_n stays inside r*(.)
            return (1.0 - z) * n + z * h_prev

        hf_new = gru(gi_f, gh_f, hf)
        hb_new = gru(gi_b, gh_b, hb)

        out_f_ref[t] = hf_new
        out_b_ref[T - 1 - t] = hb_new
        return hf_new, hb_new

    hf_last, hb_last = jax.lax.fori_loop(0, T, step, (h0, h0), unroll=True)

    # s = tanh(fc(cat(h_fwd_last, h_bwd_last)))
    cat = jnp.concatenate([hf_last, hb_last], axis=1).astype(jnp.bfloat16)   # [B, 2H]
    s_ref[...] = jnp.tanh(
        jnp.dot(cat, wfc_ref[...], preferred_element_type=jnp.float32) + bfc_ref[...])


def encoder_forward(src, params):
    """src: [src_len, batch] int32. Returns (enc_output [T,B,2H], s [B,D])."""
    T, B = src.shape
    E = params["emb_table"].shape[1]
    H = params["whh_f"].shape[0]
    D = params["wfc"].shape[1]
    G = 3 * H

    # Embedding gather (glue) + bf16 cast of MXU operands; dropout == identity (eval).
    emb2d = params["emb_table"][src].reshape(T * B, E).astype(jnp.bfloat16)

    # Fused weight layouts: columns = [r_f, z_f, n_f, r_b, z_b, n_b], each of width H.
    wih = jnp.concatenate([params["wih_f"], params["wih_b"]], axis=1).astype(jnp.bfloat16)
    whh = jnp.concatenate([params["whh_f"], params["whh_b"]], axis=1).astype(jnp.bfloat16)
    bih = jnp.concatenate([params["bih_f"], params["bih_b"]], axis=1)
    bhh = jnp.concatenate([params["bhh_f"], params["bhh_b"]], axis=1)
    wfc = params["wfc"].astype(jnp.bfloat16)
    bfc = params["bfc"]

    vmem = pl.BlockSpec(memory_space=pltpu.MemorySpace.VMEM)
    args = (emb2d, wih, bih, whh, bhh, wfc, bfc)

    out_f, out_b, s = pl.pallas_call(
        encoder_kernel,
        out_shape=(
            jax.ShapeDtypeStruct((T, B, H), jnp.float32),   # fwd hidden per step
            jax.ShapeDtypeStruct((T, B, H), jnp.float32),   # bwd hidden per step
            jax.ShapeDtypeStruct((B, D), jnp.float32),      # s
        ),
        in_specs=[vmem] * len(args),
        out_specs=(vmem, vmem, vmem),
        scratch_shapes=[
            pltpu.VMEM((T * B, 2 * G), jnp.float32),        # precomputed input projection
        ],
    )(*args)

    # Lane concat (fwd || bwd) done once in the wrapper -> no half-lane masked writes
    # and no epilogue read-back/concat inside the kernel.
    enc_output = jnp.concatenate([out_f, out_b], axis=-1)   # [T, B, 2H]
    return enc_output, s


# ------------------------- pure-JAX reference (f32) --------------------------
def _gru_dir_ref(emb, wih, whh, bih, bhh, reverse):
    T = emb.shape[0]
    H = whh.shape[0]
    h0 = jnp.zeros((emb.shape[1], H), jnp.float32)
    idxs = jnp.arange(T)[::-1] if reverse else jnp.arange(T)

    def step(h, t):
        x = emb[t]
        gi = x @ wih + bih
        gh = h @ whh + bhh
        r = jax.nn.sigmoid(gi[:, :H] + gh[:, :H])
        z = jax.nn.sigmoid(gi[:, H:2 * H] + gh[:, H:2 * H])
        n = jnp.tanh(gi[:, 2 * H:] + r * gh[:, 2 * H:])
        h_new = (1.0 - z) * n + z * h
        return h_new, h_new

    h_last, hs = jax.lax.scan(step, h0, idxs)
    if reverse:
        hs = hs[::-1]
    return hs, h_last


def encoder_ref(src, params):
    emb = params["emb_table"][src]
    hf_all, hf_last = _gru_dir_ref(emb, params["wih_f"], params["whh_f"],
                                   params["bih_f"], params["bhh_f"], reverse=False)
    hb_all, hb_last = _gru_dir_ref(emb, params["wih_b"], params["whh_b"],
                                   params["bih_b"], params["bhh_b"], reverse=True)
    enc_output = jnp.concatenate([hf_all, hb_all], axis=-1)
    cat = jnp.concatenate([hf_last, hb_last], axis=-1)
    s = jnp.tanh(cat @ params["wfc"] + params["bfc"])
    return enc_output, s


# ----------------------------------------------------------------------------
if __name__ == "__main__":
    INPUT_DIM = 50      # vocab size
    EMB_DIM = 16
    ENC_HID = 32
    DEC_HID = 32
    SRC_LEN = 8
    BATCH = 2

    key = jax.random.PRNGKey(0)
    ks = jax.random.split(key, 12)

    def u(k, shape, scale=0.1):
        return jax.random.uniform(k, shape, jnp.float32, -scale, scale)

    H, E = ENC_HID, EMB_DIM
    params = {
        "emb_table": u(ks[0], (INPUT_DIM, E), 0.5),
        # forward-direction GRU weights, layout [in, 3H], gate order (r, z, n)
        "wih_f": u(ks[1], (E, 3 * H)),
        "whh_f": u(ks[2], (H, 3 * H)),
        "bih_f": u(ks[3], (1, 3 * H)),
        "bhh_f": u(ks[4], (1, 3 * H)),
        # backward direction
        "wih_b": u(ks[5], (E, 3 * H)),
        "whh_b": u(ks[6], (H, 3 * H)),
        "bih_b": u(ks[7], (1, 3 * H)),
        "bhh_b": u(ks[8], (1, 3 * H)),
        # fc: [2H, D]
        "wfc": u(ks[9], (2 * H, DEC_HID)),
        "bfc": u(ks[10], (1, DEC_HID)),
    }

    src = jax.random.randint(ks[11], (SRC_LEN, BATCH), 0, INPUT_DIM, dtype=jnp.int32)

    enc_output, s = encoder_forward(src, params)
    jax.block_until_ready((enc_output, s))

    # sanity check vs pure-JAX f32 reference (loose tol: bf16 MXU operands vs f32 XLA)
    enc_ref_out, s_ref_out = encoder_ref(src, params)
    np.testing.assert_allclose(np.asarray(enc_output), np.asarray(enc_ref_out),
                               rtol=2e-2, atol=2e-2)
    np.testing.assert_allclose(np.asarray(s), np.asarray(s_ref_out),
                               rtol=2e-2, atol=2e-2)

    assert enc_output.shape == (SRC_LEN, BATCH, 2 * H)
    assert s.shape == (BATCH, DEC_HID)
    print("KERNEL_OK")
</pallas_src>

<mosaic_0001>
module attributes {stable_mosaic.version = 11 : i64} {
  func.func @encoder_kernel(%arg0: memref<16x16xbf16, #tpu.memory_space<vmem>>, %arg1: memref<16x192xbf16, #tpu.memory_space<vmem>>, %arg2: memref<1x192xf32, #tpu.memory_space<vmem>>, %arg3: memref<32x192xbf16, #tpu.memory_space<vmem>>, %arg4: memref<1x192xf32, #tpu.memory_space<vmem>>, %arg5: memref<64x32xbf16, #tpu.memory_space<vmem>>, %arg6: memref<1x32xf32, #tpu.memory_space<vmem>>, %arg7: memref<8x2x32xf32, #tpu.memory_space<vmem>>, %arg8: memref<8x2x32xf32, #tpu.memory_space<vmem>>, %arg9: memref<2x32xf32, #tpu.memory_space<vmem>>, %arg10: memref<16x192xf32, #tpu.memory_space<vmem>>) attributes {dimension_semantics = [], scalar_prefetch = 0 : i64, scratch_operands = 1 : i64, tpu.core_type = #tpu.core_type<tc>} {
    %c0 = arith.constant 0 : index
    %c0_0 = arith.constant 0 : index
    %0 = vector.load %arg0[%c0, %c0_0] : memref<16x16xbf16, #tpu.memory_space<vmem>>, vector<16x16xbf16>
    %c0_1 = arith.constant 0 : index
    %c0_2 = arith.constant 0 : index
    %1 = vector.load %arg1[%c0_1, %c0_2] : memref<16x192xbf16, #tpu.memory_space<vmem>>, vector<16x192xbf16>
    %cst = arith.constant dense<0.000000e+00> : vector<16x192xf32>
    %2 = tpu.matmul %0, %1, %cst {dimension_numbers = #tpu.dot_dimension_numbers<[1], [0], [0], [1], [0, 0, 1, 1], [], []>} : vector<16x16xbf16>, vector<16x192xbf16>, vector<16x192xf32> -> vector<16x192xf32>
    %c0_3 = arith.constant 0 : index
    %c0_4 = arith.constant 0 : index
    %3 = vector.load %arg2[%c0_3, %c0_4] : memref<1x192xf32, #tpu.memory_space<vmem>>, vector<1x192xf32>
    %4 = vector.broadcast %3 : vector<1x192xf32> to vector<16x192xf32>
    %5 = arith.addf %2, %4 : vector<16x192xf32>
    %c0_5 = arith.constant 0 : index
    %c0_6 = arith.constant 0 : index
    %6 = vector.load %arg10[%c0_5, %c0_6] : memref<16x192xf32, #tpu.memory_space<vmem>>, vector<16x192xf32>
    tpu.vector_store %arg10[%c0_5, %c0_6], %5 {strides = array<i32>} : memref<16x192xf32, #tpu.memory_space<vmem>>, vector<16x192xf32>,
    %c0_7 = arith.constant 0 : index
    %c0_8 = arith.constant 0 : index
    %7 = vector.load %arg3[%c0_7, %c0_8] : memref<32x192xbf16, #tpu.memory_space<vmem>>, vector<32x192xbf16>
    %c0_9 = arith.constant 0 : index
    %c0_10 = arith.constant 0 : index
    %8 = vector.load %arg4[%c0_9, %c0_10] : memref<1x192xf32, #tpu.memory_space<vmem>>, vector<1x192xf32>
    %cst_11 = arith.constant 0.000000e+00 : f32
    %9 = vector.broadcast %cst_11 : f32 to vector<2x32xf32>
    %c0_i32 = arith.constant 0 : i32
    %c2_i32 = arith.constant 2 : i32
    %10 = arith.muli %c0_i32, %c2_i32 : i32
    %11 = arith.index_cast %10 : i32 to index
    %c0_12 = arith.constant 0 : index
    %12 = vector.load %arg10[%11, %c0_12] : memref<16x192xf32, #tpu.memory_space<vmem>>, vector<2x192xf32>
    %c7_i32 = arith.constant 7 : i32
    %13 = arith.subi %c7_i32, %c0_i32 : i32
    %c2_i32_13 = arith.constant 2 : i32
    %14 = arith.muli %13, %c2_i32_13 : i32
    %15 = arith.index_cast %14 : i32 to index
    %c0_14 = arith.constant 0 : index
    %16 = vector.load %arg10[%15, %c0_14] : memref<16x192xf32, #tpu.memory_space<vmem>>, vector<2x192xf32>
    %17 = vector.extract_strided_slice %12 {offsets = [0, 0], sizes = [2, 96], strides = [1, 1]} : vector<2x192xf32> to vector<2x96xf32>
    %18 = vector.extract_strided_slice %16 {offsets = [0, 96], sizes = [2, 96], strides = [1, 1]} : vector<2x192xf32> to vector<2x96xf32>
    %19 = tpu.concatenate %9, %9 in 0 : vector<2x32xf32>, vector<2x32xf32> -> vector<4x32xf32>
    %20 = arith.truncf %19 : vector<4x32xf32> to vector<4x32xbf16>
    %cst_15 = arith.constant dense<0.000000e+00> : vector<4x192xf32>
    %21 = tpu.matmul %20, %7, %cst_15 {dimension_numbers = #tpu.dot_dimension_numbers<[1], [0], [0], [1], [0, 0, 1, 1], [], []>} : vector<4x32xbf16>, vector<32x192xbf16>, vector<4x192xf32> -> vector<4x192xf32>
    %22 = vector.broadcast %8 : vector<1x192xf32> to vector<4x192xf32>
    %23 = arith.addf %21, %22 : vector<4x192xf32>
    %24 = vector.extract_strided_slice %23 {offsets = [0, 0], sizes = [2, 96], strides = [1, 1]} : vector<4x192xf32> to vector<2x96xf32>
    %25 = vector.extract_strided_slice %23 {offsets = [2, 96], sizes = [2, 96], strides = [1, 1]} : vector<4x192xf32> to vector<2x96xf32>
    %26 = vector.extract_strided_slice %17 {offsets = [0, 0], sizes = [2, 32], strides = [1, 1]} : vector<2x96xf32> to vector<2x32xf32>
    %27 = vector.extract_strided_slice %24 {offsets = [0, 0], sizes = [2, 32], strides = [1, 1]} : vector<2x96xf32> to vector<2x32xf32>
    %28 = arith.addf %26, %27 : vector<2x32xf32>
    %29 = arith.negf %28 : vector<2x32xf32>
    %30 = math.exp %29 : vector<2x32xf32>
    %cst_16 = arith.constant 1.000000e+00 : f32
    %31 = vector.broadcast %cst_16 : f32 to vector<2x32xf32>
    %32 = arith.addf %31, %30 : vector<2x32xf32>
    %33 = arith.divf %31, %32 : vector<2x32xf32>
    %34 = vector.extract_strided_slice %17 {offsets = [0, 32], sizes = [2, 32], strides = [1, 1]} : vector<2x96xf32> to vector<2x32xf32>
    %35 = vector.extract_strided_slice %24 {offsets = [0, 32], sizes = [2, 32], strides = [1, 1]} : vector<2x96xf32> to vector<2x32xf32>
    %36 = arith.addf %34, %35 : vector<2x32xf32>
    %37 = arith.negf %36 : vector<2x32xf32>
    %38 = math.exp %37 : vector<2x32xf32>
    %cst_17 = arith.constant 1.000000e+00 : f32
    %39 = vector.broadcast %cst_17 : f32 to vector<2x32xf32>
    %40 = arith.addf %39, %38 : vector<2x32xf32>
    %41 = arith.divf %39, %40 : vector<2x32xf32>
    %42 = vector.extract_strided_slice %17 {offsets = [0, 64], sizes = [2, 32], strides = [1, 1]} : vector<2x96xf32> to vector<2x32xf32>
    %43 = vector.extract_strided_slice %24 {offsets = [0, 64], sizes = [2, 32], strides = [1, 1]} : vector<2x96xf32> to vector<2x32xf32>
    %44 = arith.mulf %33, %43 : vector<2x32xf32>
    %45 = arith.addf %42, %44 : vector<2x32xf32>
    %46 = math.tanh %45 : vector<2x32xf32>
    %cst_18 = arith.constant 1.000000e+00 : f32
    %47 = vector.broadcast %cst_18 : f32 to vector<2x32xf32>
    %48 = arith.subf %47, %41 : vector<2x32xf32>
    %49 = arith.mulf %48, %46 : vector<2x32xf32>
    %50 = arith.mulf %41, %9 : vector<2x32xf32>
    %51 = arith.addf %49, %50 : vector<2x32xf32>
    %52 = vector.extract_strided_slice %18 {offsets = [0, 0], sizes = [2, 32], strides = [1, 1]} : vector<2x96xf32> to vector<2x32xf32>
    %53 = vector.extract_strided_slice %25 {offsets = [0, 0], sizes = [2, 32], strides = [1, 1]} : vector<2x96xf32> to vector<2x32xf32>
    %54 = arith.addf %52, %53 : vector<2x32xf32>
    %55 = arith.negf %54 : vector<2x32xf32>
    %56 = math.exp %55 : vector<2x32xf32>
    %cst_19 = arith.constant 1.000000e+00 : f32
    %57 = vector.broadcast %cst_19 : f32 to vector<2x32xf32>
    %58 = arith.addf %57, %56 : vector<2x32xf32>
    %59 = arith.divf %57, %58 : vector<2x32xf32>
    %60 = vector.extract_strided_slice %18 {offsets = [0, 32], sizes = [2, 32], strides = [1, 1]} : vector<2x96xf32> to vector<2x32xf32>
    %61 = vector.extract_strided_slice %25 {offsets = [0, 32], sizes = [2, 32], strides = [1, 1]} : vector<2x96xf32> to vector<2x32xf32>
    %62 = arith.addf %60, %61 : vector<2x32xf32>
    %63 = arith.negf %62 : vector<2x32xf32>
    %64 = math.exp %63 : vector<2x32xf32>
    %cst_20 = arith.constant 1.000000e+00 : f32
    %65 = vector.broadcast %cst_20 : f32 to vector<2x32xf32>
    %66 = arith.addf %65, %64 : vector<2x32xf32>
    %67 = arith.divf %65, %66 : vector<2x32xf32>
    %68 = vector.extract_strided_slice %18 {offsets = [0, 64], sizes = [2, 32], strides = [1, 1]} : vector<2x96xf32> to vector<2x32xf32>
    %69 = vector.extract_strided_slice %25 {offsets = [0, 64], sizes = [2, 32], strides = [1, 1]} : vector<2x96xf32> to vector<2x32xf32>
    %70 = arith.mulf %59, %69 : vector<2x32xf32>
    %71 = arith.addf %68, %70 : vector<2x32xf32>
    %72 = math.tanh %71 : vector<2x32xf32>
    %cst_21 = arith.constant 1.000000e+00 : f32
    %73 = vector.broadcast %cst_21 : f32 to vector<2x32xf32>
    %74 = arith.subf %73, %67 : vector<2x32xf32>
    %75 = arith.mulf %74, %72 : vector<2x32xf32>
    %76 = arith.mulf %67, %9 : vector<2x32xf32>
    %77 = arith.addf %75, %76 : vector<2x32xf32>
    %78 = arith.index_cast %c0_i32 : i32 to index
    %c0_22 = arith.constant 0 : index
    %c0_23 = arith.constant 0 : index
    %79 = vector.load %arg7[%78, %c0_22, %c0_23] : memref<8x2x32xf32, #tpu.memory_space<vmem>>, vector<1x2x32xf32>
    %80 = vector.shape_cast %79 : vector<1x2x32xf32> to vector<2x32xf32>
    %81 = vector.shape_cast %51 : vector<2x32xf32> to vector<1x2x32xf32>
    tpu.vector_store %arg7[%78, %c0_22, %c0_23], %81 {strides = array<i32>} : memref<8x2x32xf32, #tpu.memory_space<vmem>>, vector<1x2x32xf32>,
    %c7_i32_24 = arith.constant 7 : i32
    %82 = arith.subi %c7_i32_24, %c0_i32 : i32
    %83 = arith.index_cast %82 : i32 to index
    %c0_25 = arith.constant 0 : index
    %c0_26 = arith.constant 0 : index
    %84 = vector.load %arg8[%83, %c0_25, %c0_26] : memref<8x2x32xf32, #tpu.memory_space<vmem>>, vector<1x2x32xf32>
    %85 = vector.shape_cast %84 : vector<1x2x32xf32> to vector<2x32xf32>
    %86 = vector.shape_cast %77 : vector<2x32xf32> to vector<1x2x32xf32>
    tpu.vector_store %arg8[%83, %c0_25, %c0_26], %86 {strides = array<i32>} : memref<8x2x32xf32, #tpu.memory_space<vmem>>, vector<1x2x32xf32>,
    %c1_i32 = arith.constant 1 : i32
    %c2_i32_27 = arith.constant 2 : i32
    %87 = arith.muli %c1_i32, %c2_i32_27 : i32
    %88 = arith.index_cast %87 : i32 to index
    %c0_28 = arith.constant 0 : index
    %89 = vector.load %arg10[%88, %c0_28] : memref<16x192xf32, #tpu.memory_space<vmem>>, vector<2x192xf32>
    %c7_i32_29 = arith.constant 7 : i32
    %90 = arith.subi %c7_i32_29, %c1_i32 : i32
    %c2_i32_30 = arith.constant 2 : i32
    %91 = arith.muli %90, %c2_i32_30 : i32
    %92 = arith.index_cast %91 : i32 to index
    %c0_31 = arith.constant 0 : index
    %93 = vector.load %arg10[%92, %c0_31] : memref<16x192xf32, #tpu.memory_space<vmem>>, vector<2x192xf32>
    %94 = vector.extract_strided_slice %89 {offsets = [0, 0], sizes = [2, 96], strides = [1, 1]} : vector<2x192xf32> to vector<2x96xf32>
    %95 = vector.extract_strided_slice %93 {offsets = [0, 96], sizes = [2, 96], strides = [1, 1]} : vector<2x192xf32> to vector<2x96xf32>
    %96 = tpu.concatenate %51, %77 in 0 : vector<2x32xf32>, vector<2x32xf32> -> vector<4x32xf32>
    %97 = arith.truncf %96 : vector<4x32xf32> to vector<4x32xbf16>
    %cst_32 = arith.constant dense<0.000000e+00> : vector<4x192xf32>
    %98 = tpu.matmul %97, %7, %cst_32 {dimension_numbers = #tpu.dot_dimension_numbers<[1], [0], [0], [1], [0, 0, 1, 1], [], []>} : vector<4x32xbf16>, vector<32x192xbf16>, vector<4x192xf32> -> vector<4x192xf32>
    %99 = vector.broadcast %8 : vector<1x192xf32> to vector<4x192xf32>
    %100 = arith.addf %98, %99 : vector<4x192xf32>
    %101 = vector.extract_strided_slice %100 {offsets = [0, 0], sizes = [2, 96], strides = [1, 1]} : vector<4x192xf32> to vector<2x96xf32>
    %102 = vector.extract_strided_slice %100 {offsets = [2, 96], sizes = [2, 96], strides = [1, 1]} : vector<4x192xf32> to vector<2x96xf32>
    %103 = vector.extract_strided_slice %94 {offsets = [0, 0], sizes = [2, 32], strides = [1, 1]} : vector<2x96xf32> to vector<2x32xf32>
    %104 = vector.extract_strided_slice %101 {offsets = [0, 0], sizes = [2, 32], strides = [1, 1]} : vector<2x96xf32> to vector<2x32xf32>
    %105 = arith.addf %103, %104 : vector<2x32xf32>
    %106 = arith.negf %105 : vector<2x32xf32>
    %107 = math.exp %106 : vector<2x32xf32>
    %cst_33 = arith.constant 1.000000e+00 : f32
    %108 = vector.broadcast %cst_33 : f32 to vector<2x32xf32>
    %109 = arith.addf %108, %107 : vector<2x32xf32>
    %110 = arith.divf %108, %109 : vector<2x32xf32>
    %111 = vector.extract_strided_slice %94 {offsets = [0, 32], sizes = [2, 32], strides = [1, 1]} : vector<2x96xf32> to vector<2x32xf32>
    %112 = vector.extract_strided_slice %101 {offsets = [0, 32], sizes = [2, 32], strides = [1, 1]} : vector<2x96xf32> to vector<2x32xf32>
    %113 = arith.addf %111, %112 : vector<2x32xf32>
    %114 = arith.negf %113 : vector<2x32xf32>
    %115 = math.exp %114 : vector<2x32xf32>
    %cst_34 = arith.constant 1.000000e+00 : f32
    %116 = vector.broadcast %cst_34 : f32 to vector<2x32xf32>
    %117 = arith.addf %116, %115 : vector<2x32xf32>
    %118 = arith.divf %116, %117 : vector<2x32xf32>
    %119 = vector.extract_strided_slice %94 {offsets = [0, 64], sizes = [2, 32], strides = [1, 1]} : vector<2x96xf32> to vector<2x32xf32>
    %120 = vector.extract_strided_slice %101 {offsets = [0, 64], sizes = [2, 32], strides = [1, 1]} : vector<2x96xf32> to vector<2x32xf32>
    %121 = arith.mulf %110, %120 : vector<2x32xf32>
    %122 = arith.addf %119, %121 : vector<2x32xf32>
    %123 = math.tanh %122 : vector<2x32xf32>
    %cst_35 = arith.constant 1.000000e+00 : f32
    %124 = vector.broadcast %cst_35 : f32 to vector<2x32xf32>
    %125 = arith.subf %124, %118 : vector<2x32xf32>
    %126 = arith.mulf %125, %123 : vector<2x32xf32>
    %127 = arith.mulf %118, %51 : vector<2x32xf32>
    %128 = arith.addf %126, %127 : vector<2x32xf32>
    %129 = vector.extract_strided_slice %95 {offsets = [0, 0], sizes = [2, 32], strides = [1, 1]} : vector<2x96xf32> to vector<2x32xf32>
    %130 = vector.extract_strided_slice %102 {offsets = [0, 0], sizes = [2, 32], strides = [1, 1]} : vector<2x96xf32> to vector<2x32xf32>
    %131 = arith.addf %129, %130 : vector<2x32xf32>
    %132 = arith.negf %131 : vector<2x32xf32>
    %133 = math.exp %132 : vector<2x32xf32>
    %cst_36 = arith.constant 1.000000e+00 : f32
    %134 = vector.broadcast %cst_36 : f32 to vector<2x32xf32>
    %135 = arith.addf %134, %133 : vector<2x32xf32>
    %136 = arith.divf %134, %135 : vector<2x32xf32>
    %137 = vector.extract_strided_slice %95 {offsets = [0, 32], sizes = [2, 32], strides = [1, 1]} : vector<2x96xf32> to vector<2x32xf32>
    %138 = vector.extract_strided_slice %102 {offsets = [0, 32], sizes = [2, 32], strides = [1, 1]} : vector<2x96xf32> to vector<2x32xf32>
    %139 = arith.addf %137, %138 : vector<2x32xf32>
    %140 = arith.negf %139 : vector<2x32xf32>
    %141 = math.exp %140 : vector<2x32xf32>
    %cst_37 = arith.constant 1.000000e+00 : f32
    %142 = vector.broadcast %cst_37 : f32 to vector<2x32xf32>
    %143 = arith.addf %142, %141 : vector<2x32xf32>
    %144 = arith.divf %142, %143 : vector<2x32xf32>
    %145 = vector.extract_strided_slice %95 {offsets = [0, 64], sizes = [2, 32], strides = [1, 1]} : vector<2x96xf32> to vector<2x32xf32>
    %146 = vector.extract_strided_slice %102 {offsets = [0, 64], sizes = [2, 32], strides = [1, 1]} : vector<2x96xf32> to vector<2x32xf32>
    %147 = arith.mulf %136, %146 : vector<2x32xf32>
    %148 = arith.addf %145, %147 : vector<2x32xf32>
    %149 = math.tanh %148 : vector<2x32xf32>
    %cst_38 = arith.constant 1.000000e+00 : f32
    %150 = vector.broadcast %cst_38 : f32 to vector<2x32xf32>
    %151 = arith.subf %150, %144 : vector<2x32xf32>
    %152 = arith.mulf %151, %149 : vector<2x32xf32>
    %153 = arith.mulf %144, %77 : vector<2x32xf32>
    %154 = arith.addf %152, %153 : vector<2x32xf32>
    %155 = arith.index_cast %c1_i32 : i32 to index
    %c0_39 = arith.constant 0 : index
    %c0_40 = arith.constant 0 : index
    %156 = vector.load %arg7[%155, %c0_39, %c0_40] : memref<8x2x32xf32, #tpu.memory_space<vmem>>, vector<1x2x32xf32>
    %157 = vector.shape_cast %156 : vector<1x2x32xf32> to vector<2x32xf32>
    %158 = vector.shape_cast %128 : vector<2x32xf32> to vector<1x2x32xf32>
    tpu.vector_store %arg7[%155, %c0_39, %c0_40], %158 {strides = array<i32>} : memref<8x2x32xf32, #tpu.memory_space<vmem>>, vector<1x2x32xf32>,
    %c7_i32_41 = arith.constant 7 : i32
    %159 = arith.subi %c7_i32_41, %c1_i32 : i32
    %160 = arith.index_cast %159 : i32 to index
    %c0_42 = arith.constant 0 : index
    %c0_43 = arith.constant 0 : index
    %161 = vector.load %arg8[%160, %c0_42, %c0_43] : memref<8x2x32xf32, #tpu.memory_space<vmem>>, vector<1x2x32xf32>
    %162 = vector.shape_cast %161 : vector<1x2x32xf32> to vector<2x32xf32>
    %163 = vector.shape_cast %154 : vector<2x32xf32> to vector<1x2x32xf32>
    tpu.vector_store %arg8[%160, %c0_42, %c0_43], %163 {strides = array<i32>} : memref<8x2x32xf32, #tpu.memory_space<vmem>>, vector<1x2x32xf32>,
    %c2_i32_44 = arith.constant 2 : i32
    %c2_i32_45 = arith.constant 2 : i32
    %164 = arith.muli %c2_i32_44, %c2_i32_45 : i32
    %165 = arith.index_cast %164 : i32 to index
    %c0_46 = arith.constant 0 : index
    %166 = vector.load %arg10[%165, %c0_46] : memref<16x192xf32, #tpu.memory_space<vmem>>, vector<2x192xf32>
    %c7_i32_47 = arith.constant 7 : i32
    %167 = arith.subi %c7_i32_47, %c2_i32_44 : i32
    %c2_i32_48 = arith.constant 2 : i32
    %168 = arith.muli %167, %c2_i32_48 : i32
    %169 = arith.index_cast %168 : i32 to index
    %c0_49 = arith.constant 0 : index
    %170 = vector.load %arg10[%169, %c0_49] : memref<16x192xf32, #tpu.memory_space<vmem>>, vector<2x192xf32>
    %171 = vector.extract_strided_slice %166 {offsets = [0, 0], sizes = [2, 96], strides = [1, 1]} : vector<2x192xf32> to vector<2x96xf32>
    %172 = vector.extract_strided_slice %170 {offsets = [0, 96], sizes = [2, 96], strides = [1, 1]} : vector<2x192xf32> to vector<2x96xf32>
    %173 = tpu.concatenate %128, %154 in 0 : vector<2x32xf32>, vector<2x32xf32> -> vector<4x32xf32>
    %174 = arith.truncf %173 : vector<4x32xf32> to vector<4x32xbf16>
    %cst_50 = arith.constant dense<0.000000e+00> : vector<4x192xf32>
    %175 = tpu.matmul %174, %7, %cst_50 {dimension_numbers = #tpu.dot_dimension_numbers<[1], [0], [0], [1], [0, 0, 1, 1], [], []>} : vector<4x32xbf16>, vector<32x192xbf16>, vector<4x192xf32> -> vector<4x192xf32>
    %176 = vector.broadcast %8 : vector<1x192xf32> to vector<4x192xf32>
    %177 = arith.addf %175, %176 : vector<4x192xf32>
    %178 = vector.extract_strided_slice %177 {offsets = [0, 0], sizes = [2, 96], strides = [1, 1]} : vector<4x192xf32> to vector<2x96xf32>
    %179 = vector.extract_strided_slice %177 {offsets = [2, 96], sizes = [2, 96], strides = [1, 1]} : vector<4x192xf32> to vector<2x96xf32>
    %180 = vector.extract_strided_slice %171 {offsets = [0, 0], sizes = [2, 32], strides = [1, 1]} : vector<2x96xf32> to vector<2x32xf32>
    %181 = vector.extract_strided_slice %178 {offsets = [0, 0], sizes = [2, 32], strides = [1, 1]} : vector<2x96xf32> to vector<2x32xf32>
    %182 = arith.addf %180, %181 : vector<2x32xf32>
    %183 = arith.negf %182 : vector<2x32xf32>
    %184 = math.exp %183 : vector<2x32xf32>
    %cst_51 = arith.constant 1.000000e+00 : f32
    %185 = vector.broadcast %cst_51 : f32 to vector<2x32xf32>
    %186 = arith.addf %185, %184 : vector<2x32xf32>
    %187 = arith.divf %185, %186 : vector<2x32xf32>
    %188 = vector.extract_strided_slice %171 {offsets = [0, 32], sizes = [2, 32], strides = [1, 1]} : vector<2x96xf32> to vector<2x32xf32>
    %189 = vector.extract_strided_slice %178 {offsets = [0, 32], sizes = [2, 32], strides = [1, 1]} : vector<2x96xf32> to vector<2x32xf32>
    %190 = arith.addf %188, %189 : vector<2x32xf32>
    %191 = arith.negf %190 : vector<2x32xf32>
    %192 = math.exp %191 : vector<2x32xf32>
    %cst_52 = arith.constant 1.000000e+00 : f32
    %193 = vector.broadcast %cst_52 : f32 to vector<2x32xf32>
    %194 = arith.addf %193, %192 : vector<2x32xf32>
    %195 = arith.divf %193, %194 : vector<2x32xf32>
    %196 = vector.extract_strided_slice %171 {offsets = [0, 64], sizes = [2, 32], strides = [1, 1]} : vector<2x96xf32> to vector<2x32xf32>
    %197 = vector.extract_strided_slice %178 {offsets = [0, 64], sizes = [2, 32], strides = [1, 1]} : vector<2x96xf32> to vector<2x32xf32>
    %198 = arith.mulf %187, %197 : vector<2x32xf32>
    %199 = arith.addf %196, %198 : vector<2x32xf32>
    %200 = math.tanh %199 : vector<2x32xf32>
    %cst_53 = arith.constant 1.000000e+00 : f32
    %201 = vector.broadcast %cst_53 : f32 to vector<2x32xf32>
    %202 = arith.subf %201, %195 : vector<2x32xf32>
    %203 = arith.mulf %202, %200 : vector<2x32xf32>
    %204 = arith.mulf %195, %128 : vector<2x32xf32>
    %205 = arith.addf %203, %204 : vector<2x32xf32>
    %206 = vector.extract_strided_slice %172 {offsets = [0, 0], sizes = [2, 32], strides = [1, 1]} : vector<2x96xf32> to vector<2x32xf32>
    %207 = vector.extract_strided_slice %179 {offsets = [0, 0], sizes = [2, 32], strides = [1, 1]} : vector<2x96xf32> to vector<2x32xf32>
    %208 = arith.addf %206, %207 : vector<2x32xf32>
    %209 = arith.negf %208 : vector<2x32xf32>
    %210 = math.exp %209 : vector<2x32xf32>
    %cst_54 = arith.constant 1.000000e+00 : f32
    %211 = vector.broadcast %cst_54 : f32 to vector<2x32xf32>
    %212 = arith.addf %211, %210 : vector<2x32xf32>
    %213 = arith.divf %211, %212 : vector<2x32xf32>
    %214 = vector.extract_strided_slice %172 {offsets = [0, 32], sizes = [2, 32], strides = [1, 1]} : vector<2x96xf32> to vector<2x32xf32>
    %215 = vector.extract_strided_slice %179 {offsets = [0, 32], sizes = [2, 32], strides = [1, 1]} : vector<2x96xf32> to vector<2x32xf32>
    %216 = arith.addf %214, %215 : vector<2x32xf32>
    %217 = arith.negf %216 : vector<2x32xf32>
    %218 = math.exp %217 : vector<2x32xf32>
    %cst_55 = arith.constant 1.000000e+00 : f32
    %219 = vector.broadcast %cst_55 : f32 to vector<2x32xf32>
    %220 = arith.addf %219, %218 : vector<2x32xf32>
    %221 = arith.divf %219, %220 : vector<2x32xf32>
    %222 = vector.extract_strided_slice %172 {offsets = [0, 64], sizes = [2, 32], strides = [1, 1]} : vector<2x96xf32> to vector<2x32xf32>
    %223 = vector.extract_strided_slice %179 {offsets = [0, 64], sizes = [2, 32], strides = [1, 1]} : vector<2x96xf32> to vector<2x32xf32>
    %224 = arith.mulf %213, %223 : vector<2x32xf32>
    %225 = arith.addf %222, %224 : vector<2x32xf32>
    %226 = math.tanh %225 : vector<2x32xf32>
    %cst_56 = arith.constant 1.000000e+00 : f32
    %227 = vector.broadcast %cst_56 : f32 to vector<2x32xf32>
    %228 = arith.subf %227, %221 : vector<2x32xf32>
    %229 = arith.mulf %228, %226 : vector<2x32xf32>
    %230 = arith.mulf %221, %154 : vector<2x32xf32>
    %231 = arith.addf %229, %230 : vector<2x32xf32>
    %232 = arith.index_cast %c2_i32_44 : i32 to index
    %c0_57 = arith.constant 0 : index
    %c0_58 = arith.constant 0 : index
    %233 = vector.load %arg7[%232, %c0_57, %c0_58] : memref<8x2x32xf32, #tpu.memory_space<vmem>>, vector<1x2x32xf32>
    %234 = vector.shape_cast %233 : vector<1x2x32xf32> to vector<2x32xf32>
    %235 = vector.shape_cast %205 : vector<2x32xf32> to vector<1x2x32xf32>
    tpu.vector_store %arg7[%232, %c0_57, %c0_58], %235 {strides = array<i32>} : memref<8x2x32xf32, #tpu.memory_space<vmem>>, vector<1x2x32xf32>,
    %c7_i32_59 = arith.constant 7 : i32
    %236 = arith.subi %c7_i32_59, %c2_i32_44 : i32
    %237 = arith.index_cast %236 : i32 to index
    %c0_60 = arith.constant 0 : index
    %c0_61 = arith.constant 0 : index
    %238 = vector.load %arg8[%237, %c0_60, %c0_61] : memref<8x2x32xf32, #tpu.memory_space<vmem>>, vector<1x2x32xf32>
    %239 = vector.shape_cast %238 : vector<1x2x32xf32> to vector<2x32xf32>
    %240 = vector.shape_cast %231 : vector<2x32xf32> to vector<1x2x32xf32>
    tpu.vector_store %arg8[%237, %c0_60, %c0_61], %240 {strides = array<i32>} : memref<8x2x32xf32, #tpu.memory_space<vmem>>, vector<1x2x32xf32>,
    %c3_i32 = arith.constant 3 : i32
    %c2_i32_62 = arith.constant 2 : i32
    %241 = arith.muli %c3_i32, %c2_i32_62 : i32
    %242 = arith.index_cast %241 : i32 to index
    %c0_63 = arith.constant 0 : index
    %243 = vector.load %arg10[%242, %c0_63] : memref<16x192xf32, #tpu.memory_space<vmem>>, vector<2x192xf32>
    %c7_i32_64 = arith.constant 7 : i32
    %244 = arith.subi %c7_i32_64, %c3_i32 : i32
    %c2_i32_65 = arith.constant 2 : i32
    %245 = arith.muli %244, %c2_i32_65 : i32
    %246 = arith.index_cast %245 : i32 to index
    %c0_66 = arith.constant 0 : index
    %247 = vector.load %arg10[%246, %c0_66] : memref<16x192xf32, #tpu.memory_space<vmem>>, vector<2x192xf32>
    %248 = vector.extract_strided_slice %243 {offsets = [0, 0], sizes = [2, 96], strides = [1, 1]} : vector<2x192xf32> to vector<2x96xf32>
    %249 = vector.extract_strided_slice %247 {offsets = [0, 96], sizes = [2, 96], strides = [1, 1]} : vector<2x192xf32> to vector<2x96xf32>
    %250 = tpu.concatenate %205, %231 in 0 : vector<2x32xf32>, vector<2x32xf32> -> vector<4x32xf32>
    %251 = arith.truncf %250 : vector<4x32xf32> to vector<4x32xbf16>
    %cst_67 = arith.constant dense<0.000000e+00> : vector<4x192xf32>
    %252 = tpu.matmul %251, %7, %cst_67 {dimension_numbers = #tpu.dot_dimension_numbers<[1], [0], [0], [1], [0, 0, 1, 1], [], []>} : vector<4x32xbf16>, vector<32x192xbf16>, vector<4x192xf32> -> vector<4x192xf32>
    %253 = vector.broadcast %8 : vector<1x192xf32> to vector<4x192xf32>
    %254 = arith.addf %252, %253 : vector<4x192xf32>
    %255 = vector.extract_strided_slice %254 {offsets = [0, 0], sizes = [2, 96], strides = [1, 1]} : vector<4x192xf32> to vector<2x96xf32>
    %256 = vector.extract_strided_slice %254 {offsets = [2, 96], sizes = [2, 96], strides = [1, 1]} : vector<4x192xf32> to vector<2x96xf32>
    %257 = vector.extract_strided_slice %248 {offsets = [0, 0], sizes = [2, 32], strides = [1, 1]} : vector<2x96xf32> to vector<2x32xf32>
    %258 = vector.extract_strided_slice %255 {offsets = [0, 0], sizes = [2, 32], strides = [1, 1]} : vector<2x96xf32> to vector<2x32xf32>
    %259 = arith.addf %257, %258 : vector<2x32xf32>
    %260 = arith.negf %259 : vector<2x32xf32>
    %261 = math.exp %260 : vector<2x32xf32>
    %cst_68 = arith.constant 1.000000e+00 : f32
    %262 = vector.broadcast %cst_68 : f32 to vector<2x32xf32>
    %263 = arith.addf %262, %261 : vector<2x32xf32>
    %264 = arith.divf %262, %263 : vector<2x32xf32>
    %265 = vector.extract_strided_slice %248 {offsets = [0, 32], sizes = [2, 32], strides = [1, 1]} : vector<2x96xf32> to vector<2x32xf32>
    %266 = vector.extract_strided_slice %255 {offsets = [0, 32], sizes = [2, 32], strides = [1, 1]} : vector<2x96xf32> to vector<2x32xf32>
    %267 = arith.addf %265, %266 : vector<2x32xf32>
    %268 = arith.negf %267 : vector<2x32xf32>
    %269 = math.exp %268 : vector<2x32xf32>
    %cst_69 = arith.constant 1.000000e+00 : f32
    %270 = vector.broadcast %cst_69 : f32 to vector<2x32xf32>
    %271 = arith.addf %270, %269 : vector<2x32xf32>
    %272 = arith.divf %270, %271 : vector<2x32xf32>
    %273 = vector.extract_strided_slice %248 {offsets = [0, 64], sizes = [2, 32], strides = [1, 1]} : vector<2x96xf32> to vector<2x32xf32>
    %274 = vector.extract_strided_slice %255 {offsets = [0, 64], sizes = [2, 32], strides = [1, 1]} : vector<2x96xf32> to vector<2x32xf32>
    %275 = arith.mulf %264, %274 : vector<2x32xf32>
    %276 = arith.addf %273, %275 : vector<2x32xf32>
    %277 = math.tanh %276 : vector<2x32xf32>
    %cst_70 = arith.constant 1.000000e+00 : f32
    %278 = vector.broadcast %cst_70 : f32 to vector<2x32xf32>
    %279 = arith.subf %278, %272 : vector<2x32xf32>
    %280 = arith.mulf %279, %277 : vector<2x32xf32>
    %281 = arith.mulf %272, %205 : vector<2x32xf32>
    %282 = arith.addf %280, %281 : vector<2x32xf32>
    %283 = vector.extract_strided_slice %249 {offsets = [0, 0], sizes = [2, 32], strides = [1, 1]} : vector<2x96xf32> to vector<2x32xf32>
    %284 = vector.extract_strided_slice %256 {offsets = [0, 0], sizes = [2, 32], strides = [1, 1]} : vector<2x96xf32> to vector<2x32xf32>
    %285 = arith.addf %283, %284 : vector<2x32xf32>
    %286 = arith.negf %285 : vector<2x32xf32>
    %287 = math.exp %286 : vector<2x32xf32>
    %cst_71 = arith.constant 1.000000e+00 : f32
    %288 = vector.broadcast %cst_71 : f32 to vector<2x32xf32>
    %289 = arith.addf %288, %287 : vector<2x32xf32>
    %290 = arith.divf %288, %289 : vector<2x32xf32>
    %291 = vector.extract_strided_slice %249 {offsets = [0, 32], sizes = [2, 32], strides = [1, 1]} : vector<2x96xf32> to vector<2x32xf32>
    %292 = vector.extract_strided_slice %256 {offsets = [0, 32], sizes = [2, 32], strides = [1, 1]} : vector<2x96xf32> to vector<2x32xf32>
    %293 = arith.addf %291, %292 : vector<2x32xf32>
    %294 = arith.negf %293 : vector<2x32xf32>
    %295 = math.exp %294 : vector<2x32xf32>
    %cst_72 = arith.constant 1.000000e+00 : f32
    %296 = vector.broadcast %cst_72 : f32 to vector<2x32xf32>
    %297 = arith.addf %296, %295 : vector<2x32xf32>
    %298 = arith.divf %296, %297 : vector<2x32xf32>
    %299 = vector.extract_strided_slice %249 {offsets = [0, 64], sizes = [2, 32], strides = [1, 1]} : vector<2x96xf32> to vector<2x32xf32>
    %300 = vector.extract_strided_slice %256 {offsets = [0, 64], sizes = [2, 32], strides = [1, 1]} : vector<2x96xf32> to vector<2x32xf32>
    %301 = arith.mulf %290, %300 : vector<2x32xf32>
    %302 = arith.addf %299, %301 : vector<2x32xf32>
    %303 = math.tanh %302 : vector<2x32xf32>
    %cst_73 = arith.constant 1.000000e+00 : f32
    %304 = vector.broadcast %cst_73 : f32 to vector<2x32xf32>
    %305 = arith.subf %304, %298 : vector<2x32xf32>
    %306 = arith.mulf %305, %303 : vector<2x32xf32>
    %307 = arith.mulf %298, %231 : vector<2x32xf32>
    %308 = arith.addf %306, %307 : vector<2x32xf32>
    %309 = arith.index_cast %c3_i32 : i32 to index
    %c0_74 = arith.constant 0 : index
    %c0_75 = arith.constant 0 : index
    %310 = vector.load %arg7[%309, %c0_74, %c0_75] : memref<8x2x32xf32, #tpu.memory_space<vmem>>, vector<1x2x32xf32>
    %311 = vector.shape_cast %310 : vector<1x2x32xf32> to vector<2x32xf32>
    %312 = vector.shape_cast %282 : vector<2x32xf32> to vector<1x2x32xf32>
    tpu.vector_store %arg7[%309, %c0_74, %c0_75], %312 {strides = array<i32>} : memref<8x2x32xf32, #tpu.memory_space<vmem>>, vector<1x2x32xf32>,
    %c7_i32_76 = arith.constant 7 : i32
    %313 = arith.subi %c7_i32_76, %c3_i32 : i32
    %314 = arith.index_cast %313 : i32 to index
    %c0_77 = arith.constant 0 : index
    %c0_78 = arith.constant 0 : index
    %315 = vector.load %arg8[%314, %c0_77, %c0_78] : memref<8x2x32xf32, #tpu.memory_space<vmem>>, vector<1x2x32xf32>
    %316 = vector.shape_cast %315 : vector<1x2x32xf32> to vector<2x32xf32>
    %317 = vector.shape_cast %308 : vector<2x32xf32> to vector<1x2x32xf32>
    tpu.vector_store %arg8[%314, %c0_77, %c0_78], %317 {strides = array<i32>} : memref<8x2x32xf32, #tpu.memory_space<vmem>>, vector<1x2x32xf32>,
    %c4_i32 = arith.constant 4 : i32
    %c2_i32_79 = arith.constant 2 : i32
    %318 = arith.muli %c4_i32, %c2_i32_79 : i32
    %319 = arith.index_cast %318 : i32 to index
    %c0_80 = arith.constant 0 : index
    %320 = vector.load %arg10[%319, %c0_80] : memref<16x192xf32, #tpu.memory_space<vmem>>, vector<2x192xf32>
    %c7_i32_81 = arith.constant 7 : i32
    %321 = arith.subi %c7_i32_81, %c4_i32 : i32
    %c2_i32_82 = arith.constant 2 : i32
    %322 = arith.muli %321, %c2_i32_82 : i32
    %323 = arith.index_cast %322 : i32 to index
    %c0_83 = arith.constant 0 : index
    %324 = vector.load %arg10[%323, %c0_83] : memref<16x192xf32, #tpu.memory_space<vmem>>, vector<2x192xf32>
    %325 = vector.extract_strided_slice %320 {offsets = [0, 0], sizes = [2, 96], strides = [1, 1]} : vector<2x192xf32> to vector<2x96xf32>
    %326 = vector.extract_strided_slice %324 {offsets = [0, 96], sizes = [2, 96], strides = [1, 1]} : vector<2x192xf32> to vector<2x96xf32>
    %327 = tpu.concatenate %282, %308 in 0 : vector<2x32xf32>, vector<2x32xf32> -> vector<4x32xf32>
    %328 = arith.truncf %327 : vector<4x32xf32> to vector<4x32xbf16>
    %cst_84 = arith.constant dense<0.000000e+00> : vector<4x192xf32>
    %329 = tpu.matmul %328, %7, %cst_84 {dimension_numbers = #tpu.dot_dimension_numbers<[1], [0], [0], [1], [0, 0, 1, 1], [], []>} : vector<4x32xbf16>, vector<32x192xbf16>, vector<4x192xf32> -> vector<4x192xf32>
    %330 = vector.broadcast %8 : vector<1x192xf32> to vector<4x192xf32>
    %331 = arith.addf %329, %330 : vector<4x192xf32>
    %332 = vector.extract_strided_slice %331 {offsets = [0, 0], sizes = [2, 96], strides = [1, 1]} : vector<4x192xf32> to vector<2x96xf32>
    %333 = vector.extract_strided_slice %331 {offsets = [2, 96], sizes = [2, 96], strides = [1, 1]} : vector<4x192xf32> to vector<2x96xf32>
    %334 = vector.extract_strided_slice %325 {offsets = [0, 0], sizes = [2, 32], strides = [1, 1]} : vector<2x96xf32> to vector<2x32xf32>
    %335 = vector.extract_strided_slice %332 {offsets = [0, 0], sizes = [2, 32], strides = [1, 1]} : vector<2x96xf32> to vector<2x32xf32>
    %336 = arith.addf %334, %335 : vector<2x32xf32>
    %337 = arith.negf %336 : vector<2x32xf32>
    %338 = math.exp %337 : vector<2x32xf32>
    %cst_85 = arith.constant 1.000000e+00 : f32
    %339 = vector.broadcast %cst_85 : f32 to vector<2x32xf32>
    %340 = arith.addf %339, %338 : vector<2x32xf32>
    %341 = arith.divf %339, %340 : vector<2x32xf32>
    %342 = vector.extract_strided_slice %325 {offsets = [0, 32], sizes = [2, 32], strides = [1, 1]} : vector<2x96xf32> to vector<2x32xf32>
    %343 = vector.extract_strided_slice %332 {offsets = [0, 32], sizes = [2, 32], strides = [1, 1]} : vector<2x96xf32> to vector<2x32xf32>
    %344 = arith.addf %342, %343 : vector<2x32xf32>
    %345 = arith.negf %344 : vector<2x32xf32>
    %346 = math.exp %345 : vector<2x32xf32>
    %cst_86 = arith.constant 1.000000e+00 : f32
    %347 = vector.broadcast %cst_86 : f32 to vector<2x32xf32>
    %348 = arith.addf %347, %346 : vector<2x32xf32>
    %349 = arith.divf %347, %348 : vector<2x32xf32>
    %350 = vector.extract_strided_slice %325 {offsets = [0, 64], sizes = [2, 32], strides = [1, 1]} : vector<2x96xf32> to vector<2x32xf32>
    %351 = vector.extract_strided_slice %332 {offsets = [0, 64], sizes = [2, 32], strides = [1, 1]} : vector<2x96xf32> to vector<2x32xf32>
    %352 = arith.mulf %341, %351 : vector<2x32xf32>
    %353 = arith.addf %350, %352 : vector<2x32xf32>
    %354 = math.tanh %353 : vector<2x32xf32>
    %cst_87 = arith.constant 1.000000e+00 : f32
    %355 = vector.broadcast %cst_87 : f32 to vector<2x32xf32>
    %356 = arith.subf %355, %349 : vector<2x32xf32>
    %357 = arith.mulf %356, %354 : vector<2x32xf32>
    %358 = arith.mulf %349, %282 : vector<2x32xf32>
    %359 = arith.addf %357, %358 : vector<2x32xf32>
    %360 = vector.extract_strided_slice %326 {offsets = [0, 0], sizes = [2, 32], strides = [1, 1]} : vector<2x96xf32> to vector<2x32xf32>
    %361 = vector.extract_strided_slice %333 {offsets = [0, 0], sizes = [2, 32], strides = [1, 1]} : vector<2x96xf32> to vector<2x32xf32>
    %362 = arith.addf %360, %361 : vector<2x32xf32>
    %363 = arith.negf %362 : vector<2x32xf32>
    %364 = math.exp %363 : vector<2x32xf32>
    %cst_88 = arith.constant 1.000000e+00 : f32
    %365 = vector.broadcast %cst_88 : f32 to vector<2x32xf32>
    %366 = arith.addf %365, %364 : vector<2x32xf32>
    %367 = arith.divf %365, %366 : vector<2x32xf32>
    %368 = vector.extract_strided_slice %326 {offsets = [0, 32], sizes = [2, 32], strides = [1, 1]} : vector<2x96xf32> to vector<2x32xf32>
    %369 = vector.extract_strided_slice %333 {offsets = [0, 32], sizes = [2, 32], strides = [1, 1]} : vector<2x96xf32> to vector<2x32xf32>
    %370 = arith.addf %368, %369 : vector<2x32xf32>
    %371 = arith.negf %370 : vector<2x32xf32>
    %372 = math.exp %371 : vector<2x32xf32>
    %cst_89 = arith.constant 1.000000e+00 : f32
    %373 = vector.broadcast %cst_89 : f32 to vector<2x32xf32>
    %374 = arith.addf %373, %372 : vector<2x32xf32>
    %375 = arith.divf %373, %374 : vector<2x32xf32>
    %376 = vector.extract_strided_slice %326 {offsets = [0, 64], sizes = [2, 32], strides = [1, 1]} : vector<2x96xf32> to vector<2x32xf32>
    %377 = vector.extract_strided_slice %333 {offsets = [0, 64], sizes = [2, 32], strides = [1, 1]} : vector<2x96xf32> to vector<2x32xf32>
    %378 = arith.mulf %367, %377 : vector<2x32xf32>
    %379 = arith.addf %376, %378 : vector<2x32xf32>
    %380 = math.tanh %379 : vector<2x32xf32>
    %cst_90 = arith.constant 1.000000e+00 : f32
    %381 = vector.broadcast %cst_90 : f32 to vector<2x32xf32>
    %382 = arith.subf %381, %375 : vector<2x32xf32>
    %383 = arith.mulf %382, %380 : vector<2x32xf32>
    %384 = arith.mulf %375, %308 : vector<2x32xf32>
    %385 = arith.addf %383, %384 : vector<2x32xf32>
    %386 = arith.index_cast %c4_i32 : i32 to index
    %c0_91 = arith.constant 0 : index
    %c0_92 = arith.constant 0 : index
    %387 = vector.load %arg7[%386, %c0_91, %c0_92] : memref<8x2x32xf32, #tpu.memory_space<vmem>>, vector<1x2x32xf32>
    %388 = vector.shape_cast %387 : vector<1x2x32xf32> to vector<2x32xf32>
    %389 = vector.shape_cast %359 : vector<2x32xf32> to vector<1x2x32xf32>
    tpu.vector_store %arg7[%386, %c0_91, %c0_92], %389 {strides = array<i32>} : memref<8x2x32xf32, #tpu.memory_space<vmem>>, vector<1x2x32xf32>,
    %c7_i32_93 = arith.constant 7 : i32
    %390 = arith.subi %c7_i32_93, %c4_i32 : i32
    %391 = arith.index_cast %390 : i32 to index
    %c0_94 = arith.constant 0 : index
    %c0_95 = arith.constant 0 : index
    %392 = vector.load %arg8[%391, %c0_94, %c0_95] : memref<8x2x32xf32, #tpu.memory_space<vmem>>, vector<1x2x32xf32>
    %393 = vector.shape_cast %392 : vector<1x2x32xf32> to vector<2x32xf32>
    %394 = vector.shape_cast %385 : vector<2x32xf32> to vector<1x2x32xf32>
    tpu.vector_store %arg8[%391, %c0_94, %c0_95], %394 {strides = array<i32>} : memref<8x2x32xf32, #tpu.memory_space<vmem>>, vector<1x2x32xf32>,
    %c5_i32 = arith.constant 5 : i32
    %c2_i32_96 = arith.constant 2 : i32
    %395 = arith.muli %c5_i32, %c2_i32_96 : i32
    %396 = arith.index_cast %395 : i32 to index
    %c0_97 = arith.constant 0 : index
    %397 = vector.load %arg10[%396, %c0_97] : memref<16x192xf32, #tpu.memory_space<vmem>>, vector<2x192xf32>
    %c7_i32_98 = arith.constant 7 : i32
    %398 = arith.subi %c7_i32_98, %c5_i32 : i32
    %c2_i32_99 = arith.constant 2 : i32
    %399 = arith.muli %398, %c2_i32_99 : i32
    %400 = arith.index_cast %399 : i32 to index
    %c0_100 = arith.constant 0 : index
    %401 = vector.load %arg10[%400, %c0_100] : memref<16x192xf32, #tpu.memory_space<vmem>>, vector<2x192xf32>
    %402 = vector.extract_strided_slice %397 {offsets = [0, 0], sizes = [2, 96], strides = [1, 1]} : vector<2x192xf32> to vector<2x96xf32>
    %403 = vector.extract_strided_slice %401 {offsets = [0, 96], sizes = [2, 96], strides = [1, 1]} : vector<2x192xf32> to vector<2x96xf32>
    %404 = tpu.concatenate %359, %385 in 0 : vector<2x32xf32>, vector<2x32xf32> -> vector<4x32xf32>
    %405 = arith.truncf %404 : vector<4x32xf32> to vector<4x32xbf16>
    %cst_101 = arith.constant dense<0.000000e+00> : vector<4x192xf32>
    %406 = tpu.matmul %405, %7, %cst_101 {dimension_numbers = #tpu.dot_dimension_numbers<[1], [0], [0], [1], [0, 0, 1, 1], [], []>} : vector<4x32xbf16>, vector<32x192xbf16>, vector<4x192xf32> -> vector<4x192xf32>
    %407 = vector.broadcast %8 : vector<1x192xf32> to vector<4x192xf32>
    %408 = arith.addf %406, %407 : vector<4x192xf32>
    %409 = vector.extract_strided_slice %408 {offsets = [0, 0], sizes = [2, 96], strides = [1, 1]} : vector<4x192xf32> to vector<2x96xf32>
    %410 = vector.extract_strided_slice %408 {offsets = [2, 96], sizes = [2, 96], strides = [1, 1]} : vector<4x192xf32> to vector<2x96xf32>
    %411 = vector.extract_strided_slice %402 {offsets = [0, 0], sizes = [2, 32], strides = [1, 1]} : vector<2x96xf32> to vector<2x32xf32>
    %412 = vector.extract_strided_slice %409 {offsets = [0, 0], sizes = [2, 32], strides = [1, 1]} : vector<2x96xf32> to vector<2x32xf32>
    %413 = arith.addf %411, %412 : vector<2x32xf32>
    %414 = arith.negf %413 : vector<2x32xf32>
    %415 = math.exp %414 : vector<2x32xf32>
    %cst_102 = arith.constant 1.000000e+00 : f32
    %416 = vector.broadcast %cst_102 : f32 to vector<2x32xf32>
    %417 = arith.addf %416, %415 : vector<2x32xf32>
    %418 = arith.divf %416, %417 : vector<2x32xf32>
    %419 = vector.extract_strided_slice %402 {offsets = [0, 32], sizes = [2, 32], strides = [1, 1]} : vector<2x96xf32> to vector<2x32xf32>
    %420 = vector.extract_strided_slice %409 {offsets = [0, 32], sizes = [2, 32], strides = [1, 1]} : vector<2x96xf32> to vector<2x32xf32>
    %421 = arith.addf %419, %420 : vector<2x32xf32>
    %422 = arith.negf %421 : vector<2x32xf32>
    %423 = math.exp %422 : vector<2x32xf32>
    %cst_103 = arith.constant 1.000000e+00 : f32
    %424 = vector.broadcast %cst_103 : f32 to vector<2x32xf32>
    %425 = arith.addf %424, %423 : vector<2x32xf32>
    %426 = arith.divf %424, %425 : vector<2x32xf32>
    %427 = vector.extract_strided_slice %402 {offsets = [0, 64], sizes = [2, 32], strides = [1, 1]} : vector<2x96xf32> to vector<2x32xf32>
    %428 = vector.extract_strided_slice %409 {offsets = [0, 64], sizes = [2, 32], strides = [1, 1]} : vector<2x96xf32> to vector<2x32xf32>
    %429 = arith.mulf %418, %428 : vector<2x32xf32>
    %430 = arith.addf %427, %429 : vector<2x32xf32>
    %431 = math.tanh %430 : vector<2x32xf32>
    %cst_104 = arith.constant 1.000000e+00 : f32
    %432 = vector.broadcast %cst_104 : f32 to vector<2x32xf32>
    %433 = arith.subf %432, %426 : vector<2x32xf32>
    %434 = arith.mulf %433, %431 : vector<2x32xf32>
    %435 = arith.mulf %426, %359 : vector<2x32xf32>
    %436 = arith.addf %434, %435 : vector<2x32xf32>
    %437 = vector.extract_strided_slice %403 {offsets = [0, 0], sizes = [2, 32], strides = [1, 1]} : vector<2x96xf32> to vector<2x32xf32>
    %438 = vector.extract_strided_slice %410 {offsets = [0, 0], sizes = [2, 32], strides = [1, 1]} : vector<2x96xf32> to vector<2x32xf32>
    %439 = arith.addf %437, %438 : vector<2x32xf32>
    %440 = arith.negf %439 : vector<2x32xf32>
    %441 = math.exp %440 : vector<2x32xf32>
    %cst_105 = arith.constant 1.000000e+00 : f32
    %442 = vector.broadcast %cst_105 : f32 to vector<2x32xf32>
    %443 = arith.addf %442, %441 : vector<2x32xf32>
    %444 = arith.divf %442, %443 : vector<2x32xf32>
    %445 = vector.extract_strided_slice %403 {offsets = [0, 32], sizes = [2, 32], strides = [1, 1]} : vector<2x96xf32> to vector<2x32xf32>
    %446 = vector.extract_strided_slice %410 {offsets = [0, 32], sizes = [2, 32], strides = [1, 1]} : vector<2x96xf32> to vector<2x32xf32>
    %447 = arith.addf %445, %446 : vector<2x32xf32>
    %448 = arith.negf %447 : vector<2x32xf32>
    %449 = math.exp %448 : vector<2x32xf32>
    %cst_106 = arith.constant 1.000000e+00 : f32
    %450 = vector.broadcast %cst_106 : f32 to vector<2x32xf32>
    %451 = arith.addf %450, %449 : vector<2x32xf32>
    %452 = arith.divf %450, %451 : vector<2x32xf32>
    %453 = vector.extract_strided_slice %403 {offsets = [0, 64], sizes = [2, 32], strides = [1, 1]} : vector<2x96xf32> to vector<2x32xf32>
    %454 = vector.extract_strided_slice %410 {offsets = [0, 64], sizes = [2, 32], strides = [1, 1]} : vector<2x96xf32> to vector<2x32xf32>
    %455 = arith.mulf %444, %454 : vector<2x32xf32>
    %456 = arith.addf %453, %455 : vector<2x32xf32>
    %457 = math.tanh %456 : vector<2x32xf32>
    %cst_107 = arith.constant 1.000000e+00 : f32
    %458 = vector.broadcast %cst_107 : f32 to vector<2x32xf32>
    %459 = arith.subf %458, %452 : vector<2x32xf32>
    %460 = arith.mulf %459, %457 : vector<2x32xf32>
    %461 = arith.mulf %452, %385 : vector<2x32xf32>
    %462 = arith.addf %460, %461 : vector<2x32xf32>
    %463 = arith.index_cast %c5_i32 : i32 to index
    %c0_108 = arith.constant 0 : index
    %c0_109 = arith.constant 0 : index
    %464 = vector.load %arg7[%463, %c0_108, %c0_109] : memref<8x2x32xf32, #tpu.memory_space<vmem>>, vector<1x2x32xf32>
    %465 = vector.shape_cast %464 : vector<1x2x32xf32> to vector<2x32xf32>
    %466 = vector.shape_cast %436 : vector<2x32xf32> to vector<1x2x32xf32>
    tpu.vector_store %arg7[%463, %c0_108, %c0_109], %466 {strides = array<i32>} : memref<8x2x32xf32, #tpu.memory_space<vmem>>, vector<1x2x32xf32>,
    %c7_i32_110 = arith.constant 7 : i32
    %467 = arith.subi %c7_i32_110, %c5_i32 : i32
    %468 = arith.index_cast %467 : i32 to index
    %c0_111 = arith.constant 0 : index
    %c0_112 = arith.constant 0 : index
    %469 = vector.load %arg8[%468, %c0_111, %c0_112] : memref<8x2x32xf32, #tpu.memory_space<vmem>>, vector<1x2x32xf32>
    %470 = vector.shape_cast %469 : vector<1x2x32xf32> to vector<2x32xf32>
    %471 = vector.shape_cast %462 : vector<2x32xf32> to vector<1x2x32xf32>
    tpu.vector_store %arg8[%468, %c0_111, %c0_112], %471 {strides = array<i32>} : memref<8x2x32xf32, #tpu.memory_space<vmem>>, vector<1x2x32xf32>,
    %c6_i32 = arith.constant 6 : i32
    %c2_i32_113 = arith.constant 2 : i32
    %472 = arith.muli %c6_i32, %c2_i32_113 : i32
    %473 = arith.index_cast %472 : i32 to index
    %c0_114 = arith.constant 0 : index
    %474 = vector.load %arg10[%473, %c0_114] : memref<16x192xf32, #tpu.memory_space<vmem>>, vector<2x192xf32>
    %c7_i32_115 = arith.constant 7 : i32
    %475 = arith.subi %c7_i32_115, %c6_i32 : i32
    %c2_i32_116 = arith.constant 2 : i32
    %476 = arith.muli %475, %c2_i32_116 : i32
    %477 = arith.index_cast %476 : i32 to index
    %c0_117 = arith.constant 0 : index
    %478 = vector.load %arg10[%477, %c0_117] : memref<16x192xf32, #tpu.memory_space<vmem>>, vector<2x192xf32>
    %479 = vector.extract_strided_slice %474 {offsets = [0, 0], sizes = [2, 96], strides = [1, 1]} : vector<2x192xf32> to vector<2x96xf32>
    %480 = vector.extract_strided_slice %478 {offsets = [0, 96], sizes = [2, 96], strides = [1, 1]} : vector<2x192xf32> to vector<2x96xf32>
    %481 = tpu.concatenate %436, %462 in 0 : vector<2x32xf32>, vector<2x32xf32> -> vector<4x32xf32>
    %482 = arith.truncf %481 : vector<4x32xf32> to vector<4x32xbf16>
    %cst_118 = arith.constant dense<0.000000e+00> : vector<4x192xf32>
    %483 = tpu.matmul %482, %7, %cst_118 {dimension_numbers = #tpu.dot_dimension_numbers<[1], [0], [0], [1], [0, 0, 1, 1], [], []>} : vector<4x32xbf16>, vector<32x192xbf16>, vector<4x192xf32> -> vector<4x192xf32>
    %484 = vector.broadcast %8 : vector<1x192xf32> to vector<4x192xf32>
    %485 = arith.addf %483, %484 : vector<4x192xf32>
    %486 = vector.extract_strided_slice %485 {offsets = [0, 0], sizes = [2, 96], strides = [1, 1]} : vector<4x192xf32> to vector<2x96xf32>
    %487 = vector.extract_strided_slice %485 {offsets = [2, 96], sizes = [2, 96], strides = [1, 1]} : vector<4x192xf32> to vector<2x96xf32>
    %488 = vector.extract_strided_slice %479 {offsets = [0, 0], sizes = [2, 32], strides = [1, 1]} : vector<2x96xf32> to vector<2x32xf32>
    %489 = vector.extract_strided_slice %486 {offsets = [0, 0], sizes = [2, 32], strides = [1, 1]} : vector<2x96xf32> to vector<2x32xf32>
    %490 = arith.addf %488, %489 : vector<2x32xf32>
    %491 = arith.negf %490 : vector<2x32xf32>
    %492 = math.exp %491 : vector<2x32xf32>
    %cst_119 = arith.constant 1.000000e+00 : f32
    %493 = vector.broadcast %cst_119 : f32 to vector<2x32xf32>
    %494 = arith.addf %493, %492 : vector<2x32xf32>
    %495 = arith.divf %493, %494 : vector<2x32xf32>
    %496 = vector.extract_strided_slice %479 {offsets = [0, 32], sizes = [2, 32], strides = [1, 1]} : vector<2x96xf32> to vector<2x32xf32>
    %497 = vector.extract_strided_slice %486 {offsets = [0, 32], sizes = [2, 32], strides = [1, 1]} : vector<2x96xf32> to vector<2x32xf32>
    %498 = arith.addf %496, %497 : vector<2x32xf32>
    %499 = arith.negf %498 : vector<2x32xf32>
    %500 = math.exp %499 : vector<2x32xf32>
    %cst_120 = arith.constant 1.000000e+00 : f32
    %501 = vector.broadcast %cst_120 : f32 to vector<2x32xf32>
    %502 = arith.addf %501, %500 : vector<2x32xf32>
    %503 = arith.divf %501, %502 : vector<2x32xf32>
    %504 = vector.extract_strided_slice %479 {offsets = [0, 64], sizes = [2, 32], strides = [1, 1]} : vector<2x96xf32> to vector<2x32xf32>
    %505 = vector.extract_strided_slice %486 {offsets = [0, 64], sizes = [2, 32], strides = [1, 1]} : vector<2x96xf32> to vector<2x32xf32>
    %506 = arith.mulf %495, %505 : vector<2x32xf32>
    %507 = arith.addf %504, %506 : vector<2x32xf32>
    %508 = math.tanh %507 : vector<2x32xf32>
    %cst_121 = arith.constant 1.000000e+00 : f32
    %509 = vector.broadcast %cst_121 : f32 to vector<2x32xf32>
    %510 = arith.subf %509, %503 : vector<2x32xf32>
    %511 = arith.mulf %510, %508 : vector<2x32xf32>
    %512 = arith.mulf %503, %436 : vector<2x32xf32>
    %513 = arith.addf %511, %512 : vector<2x32xf32>
    %514 = vector.extract_strided_slice %480 {offsets = [0, 0], sizes = [2, 32], strides = [1, 1]} : vector<2x96xf32> to vector<2x32xf32>
    %515 = vector.extract_strided_slice %487 {offsets = [0, 0], sizes = [2, 32], strides = [1, 1]} : vector<2x96xf32> to vector<2x32xf32>
    %516 = arith.addf %514, %515 : vector<2x32xf32>
    %517 = arith.negf %516 : vector<2x32xf32>
    %518 = math.exp %517 : vector<2x32xf32>
    %cst_122 = arith.constant 1.000000e+00 : f32
    %519 = vector.broadcast %cst_122 : f32 to vector<2x32xf32>
    %520 = arith.addf %519, %518 : vector<2x32xf32>
    %521 = arith.divf %519, %520 : vector<2x32xf32>
    %522 = vector.extract_strided_slice %480 {offsets = [0, 32], sizes = [2, 32], strides = [1, 1]} : vector<2x96xf32> to vector<2x32xf32>
    %523 = vector.extract_strided_slice %487 {offsets = [0, 32], sizes = [2, 32], strides = [1, 1]} : vector<2x96xf32> to vector<2x32xf32>
    %524 = arith.addf %522, %523 : vector<2x32xf32>
    %525 = arith.negf %524 : vector<2x32xf32>
    %526 = math.exp %525 : vector<2x32xf32>
    %cst_123 = arith.constant 1.000000e+00 : f32
    %527 = vector.broadcast %cst_123 : f32 to vector<2x32xf32>
    %528 = arith.addf %527, %526 : vector<2x32xf32>
    %529 = arith.divf %527, %528 : vector<2x32xf32>
    %530 = vector.extract_strided_slice %480 {offsets = [0, 64], sizes = [2, 32], strides = [1, 1]} : vector<2x96xf32> to vector<2x32xf32>
    %531 = vector.extract_strided_slice %487 {offsets = [0, 64], sizes = [2, 32], strides = [1, 1]} : vector<2x96xf32> to vector<2x32xf32>
    %532 = arith.mulf %521, %531 : vector<2x32xf32>
    %533 = arith.addf %530, %532 : vector<2x32xf32>
    %534 = math.tanh %533 : vector<2x32xf32>
    %cst_124 = arith.constant 1.000000e+00 : f32
    %535 = vector.broadcast %cst_124 : f32 to vector<2x32xf32>
    %536 = arith.subf %535, %529 : vector<2x32xf32>
    %537 = arith.mulf %536, %534 : vector<2x32xf32>
    %538 = arith.mulf %529, %462 : vector<2x32xf32>
    %539 = arith.addf %537, %538 : vector<2x32xf32>
    %540 = arith.index_cast %c6_i32 : i32 to index
    %c0_125 = arith.constant 0 : index
    %c0_126 = arith.constant 0 : index
    %541 = vector.load %arg7[%540, %c0_125, %c0_126] : memref<8x2x32xf32, #tpu.memory_space<vmem>>, vector<1x2x32xf32>
    %542 = vector.shape_cast %541 : vector<1x2x32xf32> to vector<2x32xf32>
    %543 = vector.shape_cast %513 : vector<2x32xf32> to vector<1x2x32xf32>
    tpu.vector_store %arg7[%540, %c0_125, %c0_126], %543 {strides = array<i32>} : memref<8x2x32xf32, #tpu.memory_space<vmem>>, vector<1x2x32xf32>,
    %c7_i32_127 = arith.constant 7 : i32
    %544 = arith.subi %c7_i32_127, %c6_i32 : i32
    %545 = arith.index_cast %544 : i32 to index
    %c0_128 = arith.constant 0 : index
    %c0_129 = arith.constant 0 : index
    %546 = vector.load %arg8[%545, %c0_128, %c0_129] : memref<8x2x32xf32, #tpu.memory_space<vmem>>, vector<1x2x32xf32>
    %547 = vector.shape_cast %546 : vector<1x2x32xf32> to vector<2x32xf32>
    %548 = vector.shape_cast %539 : vector<2x32xf32> to vector<1x2x32xf32>
    tpu.vector_store %arg8[%545, %c0_128, %c0_129], %548 {strides = array<i32>} : memref<8x2x32xf32, #tpu.memory_space<vmem>>, vector<1x2x32xf32>,
    %c7_i32_130 = arith.constant 7 : i32
    %c2_i32_131 = arith.constant 2 : i32
    %549 = arith.muli %c7_i32_130, %c2_i32_131 : i32
    %550 = arith.index_cast %549 : i32 to index
    %c0_132 = arith.constant 0 : index
    %551 = vector.load %arg10[%550, %c0_132] : memref<16x192xf32, #tpu.memory_space<vmem>>, vector<2x192xf32>
    %c7_i32_133 = arith.constant 7 : i32
    %552 = arith.subi %c7_i32_133, %c7_i32_130 : i32
    %c2_i32_134 = arith.constant 2 : i32
    %553 = arith.muli %552, %c2_i32_134 : i32
    %554 = arith.index_cast %553 : i32 to index
    %c0_135 = arith.constant 0 : index
    %555 = vector.load %arg10[%554, %c0_135] : memref<16x192xf32, #tpu.memory_space<vmem>>, vector<2x192xf32>
    %556 = vector.extract_strided_slice %551 {offsets = [0, 0], sizes = [2, 96], strides = [1, 1]} : vector<2x192xf32> to vector<2x96xf32>
    %557 = vector.extract_strided_slice %555 {offsets = [0, 96], sizes = [2, 96], strides = [1, 1]} : vector<2x192xf32> to vector<2x96xf32>
    %558 = tpu.concatenate %513, %539 in 0 : vector<2x32xf32>, vector<2x32xf32> -> vector<4x32xf32>
    %559 = arith.truncf %558 : vector<4x32xf32> to vector<4x32xbf16>
    %cst_136 = arith.constant dense<0.000000e+00> : vector<4x192xf32>
    %560 = tpu.matmul %559, %7, %cst_136 {dimension_numbers = #tpu.dot_dimension_numbers<[1], [0], [0], [1], [0, 0, 1, 1], [], []>} : vector<4x32xbf16>, vector<32x192xbf16>, vector<4x192xf32> -> vector<4x192xf32>
    %561 = vector.broadcast %8 : vector<1x192xf32> to vector<4x192xf32>
    %562 = arith.addf %560, %561 : vector<4x192xf32>
    %563 = vector.extract_strided_slice %562 {offsets = [0, 0], sizes = [2, 96], strides = [1, 1]} : vector<4x192xf32> to vector<2x96xf32>
    %564 = vector.extract_strided_slice %562 {offsets = [2, 96], sizes = [2, 96], strides = [1, 1]} : vector<4x192xf32> to vector<2x96xf32>
    %565 = vector.extract_strided_slice %556 {offsets = [0, 0], sizes = [2, 32], strides = [1, 1]} : vector<2x96xf32> to vector<2x32xf32>
    %566 = vector.extract_strided_slice %563 {offsets = [0, 0], sizes = [2, 32], strides = [1, 1]} : vector<2x96xf32> to vector<2x32xf32>
    %567 = arith.addf %565, %566 : vector<2x32xf32>
    %568 = arith.negf %567 : vector<2x32xf32>
    %569 = math.exp %568 : vector<2x32xf32>
    %cst_137 = arith.constant 1.000000e+00 : f32
    %570 = vector.broadcast %cst_137 : f32 to vector<2x32xf32>
    %571 = arith.addf %570, %569 : vector<2x32xf32>
    %572 = arith.divf %570, %571 : vector<2x32xf32>
    %573 = vector.extract_strided_slice %556 {offsets = [0, 32], sizes = [2, 32], strides = [1, 1]} : vector<2x96xf32> to vector<2x32xf32>
    %574 = vector.extract_strided_slice %563 {offsets = [0, 32], sizes = [2, 32], strides = [1, 1]} : vector<2x96xf32> to vector<2x32xf32>
    %575 = arith.addf %573, %574 : vector<2x32xf32>
    %576 = arith.negf %575 : vector<2x32xf32>
    %577 = math.exp %576 : vector<2x32xf32>
    %cst_138 = arith.constant 1.000000e+00 : f32
    %578 = vector.broadcast %cst_138 : f32 to vector<2x32xf32>
    %579 = arith.addf %578, %577 : vector<2x32xf32>
    %580 = arith.divf %578, %579 : vector<2x32xf32>
    %581 = vector.extract_strided_slice %556 {offsets = [0, 64], sizes = [2, 32], strides = [1, 1]} : vector<2x96xf32> to vector<2x32xf32>
    %582 = vector.extract_strided_slice %563 {offsets = [0, 64], sizes = [2, 32], strides = [1, 1]} : vector<2x96xf32> to vector<2x32xf32>
    %583 = arith.mulf %572, %582 : vector<2x32xf32>
    %584 = arith.addf %581, %583 : vector<2x32xf32>
    %585 = math.tanh %584 : vector<2x32xf32>
    %cst_139 = arith.constant 1.000000e+00 : f32
    %586 = vector.broadcast %cst_139 : f32 to vector<2x32xf32>
    %587 = arith.subf %586, %580 : vector<2x32xf32>
    %588 = arith.mulf %587, %585 : vector<2x32xf32>
    %589 = arith.mulf %580, %513 : vector<2x32xf32>
    %590 = arith.addf %588, %589 : vector<2x32xf32>
    %591 = vector.extract_strided_slice %557 {offsets = [0, 0], sizes = [2, 32], strides = [1, 1]} : vector<2x96xf32> to vector<2x32xf32>
    %592 = vector.extract_strided_slice %564 {offsets = [0, 0], sizes = [2, 32], strides = [1, 1]} : vector<2x96xf32> to vector<2x32xf32>
    %593 = arith.addf %591, %592 : vector<2x32xf32>
    %594 = arith.negf %593 : vector<2x32xf32>
    %595 = math.exp %594 : vector<2x32xf32>
    %cst_140 = arith.constant 1.000000e+00 : f32
    %596 = vector.broadcast %cst_140 : f32 to vector<2x32xf32>
    %597 = arith.addf %596, %595 : vector<2x32xf32>
    %598 = arith.divf %596, %597 : vector<2x32xf32>
    %599 = vector.extract_strided_slice %557 {offsets = [0, 32], sizes = [2, 32], strides = [1, 1]} : vector<2x96xf32> to vector<2x32xf32>
    %600 = vector.extract_strided_slice %564 {offsets = [0, 32], sizes = [2, 32], strides = [1, 1]} : vector<2x96xf32> to vector<2x32xf32>
    %601 = arith.addf %599, %600 : vector<2x32xf32>
    %602 = arith.negf %601 : vector<2x32xf32>
    %603 = math.exp %602 : vector<2x32xf32>
    %cst_141 = arith.constant 1.000000e+00 : f32
    %604 = vector.broadcast %cst_141 : f32 to vector<2x32xf32>
    %605 = arith.addf %604, %603 : vector<2x32xf32>
    %606 = arith.divf %604, %605 : vector<2x32xf32>
    %607 = vector.extract_strided_slice %557 {offsets = [0, 64], sizes = [2, 32], strides = [1, 1]} : vector<2x96xf32> to vector<2x32xf32>
    %608 = vector.extract_strided_slice %564 {offsets = [0, 64], sizes = [2, 32], strides = [1, 1]} : vector<2x96xf32> to vector<2x32xf32>
    %609 = arith.mulf %598, %608 : vector<2x32xf32>
    %610 = arith.addf %607, %609 : vector<2x32xf32>
    %611 = math.tanh %610 : vector<2x32xf32>
    %cst_142 = arith.constant 1.000000e+00 : f32
    %612 = vector.broadcast %cst_142 : f32 to vector<2x32xf32>
    %613 = arith.subf %612, %606 : vector<2x32xf32>
    %614 = arith.mulf %613, %611 : vector<2x32xf32>
    %615 = arith.mulf %606, %539 : vector<2x32xf32>
    %616 = arith.addf %614, %615 : vector<2x32xf32>
    %617 = arith.index_cast %c7_i32_130 : i32 to index
    %c0_143 = arith.constant 0 : index
    %c0_144 = arith.constant 0 : index
    %618 = vector.load %arg7[%617, %c0_143, %c0_144] : memref<8x2x32xf32, #tpu.memory_space<vmem>>, vector<1x2x32xf32>
    %619 = vector.shape_cast %618 : vector<1x2x32xf32> to vector<2x32xf32>
    %620 = vector.shape_cast %590 : vector<2x32xf32> to vector<1x2x32xf32>
    tpu.vector_store %arg7[%617, %c0_143, %c0_144], %620 {strides = array<i32>} : memref<8x2x32xf32, #tpu.memory_space<vmem>>, vector<1x2x32xf32>,
    %c7_i32_145 = arith.constant 7 : i32
    %621 = arith.subi %c7_i32_145, %c7_i32_130 : i32
    %622 = arith.index_cast %621 : i32 to index
    %c0_146 = arith.constant 0 : index
    %c0_147 = arith.constant 0 : index
    %623 = vector.load %arg8[%622, %c0_146, %c0_147] : memref<8x2x32xf32, #tpu.memory_space<vmem>>, vector<1x2x32xf32>
    %624 = vector.shape_cast %623 : vector<1x2x32xf32> to vector<2x32xf32>
    %625 = vector.shape_cast %616 : vector<2x32xf32> to vector<1x2x32xf32>
    tpu.vector_store %arg8[%622, %c0_146, %c0_147], %625 {strides = array<i32>} : memref<8x2x32xf32, #tpu.memory_space<vmem>>, vector<1x2x32xf32>,
    %c8_i32 = arith.constant 8 : i32
    %626 = tpu.concatenate %590, %616 in 1 : vector<2x32xf32>, vector<2x32xf32> -> vector<2x64xf32>
    %627 = arith.truncf %626 : vector<2x64xf32> to vector<2x64xbf16>
    %c0_148 = arith.constant 0 : index
    %c0_149 = arith.constant 0 : index
    %628 = vector.load %arg5[%c0_148, %c0_149] : memref<64x32xbf16, #tpu.memory_space<vmem>>, vector<64x32xbf16>
    %cst_150 = arith.constant dense<0.000000e+00> : vector<2x32xf32>
    %629 = tpu.matmul %627, %628, %cst_150 {dimension_numbers = #tpu.dot_dimension_numbers<[1], [0], [0], [1], [0, 0, 1, 1], [], []>} : vector<2x64xbf16>, vector<64x32xbf16>, vector<2x32xf32> -> vector<2x32xf32>
    %c0_151 = arith.constant 0 : index
    %c0_152 = arith.constant 0 : index
    %630 = vector.load %arg6[%c0_151, %c0_152] : memref<1x32xf32, #tpu.memory_space<vmem>>, vector<1x32xf32>
    %631 = vector.broadcast %630 : vector<1x32xf32> to vector<2x32xf32>
    %632 = arith.addf %629, %631 : vector<2x32xf32>
    %633 = math.tanh %632 : vector<2x32xf32>
    %c0_153 = arith.constant 0 : index
    %c0_154 = arith.constant 0 : index
    %634 = vector.load %arg9[%c0_153, %c0_154] : memref<2x32xf32, #tpu.memory_space<vmem>>, vector<2x32xf32>
    tpu.vector_store %arg9[%c0_153, %c0_154], %633 {strides = array<i32>} : memref<2x32xf32, #tpu.memory_space<vmem>>, vector<2x32xf32>,
    return
  }
}

</mosaic_0001>

<llo_original>
// kernel: tpu_custom_call.1
$region0: #{tpu_custom_call.1}
  #allocation0 [shape = 'u32[]', space=smem, size = 0x4, offset = 0x4, fixed_abs, tag = 'smem constant byte address 0x4 - core index']
  #allocation1 [shape = 'u32[144,128]{1,0:T(1,128)}', space=vmem, size = 0x12000, scoped, tag = 'internal scratch']
  #allocation2 [shape = 'f32[16,192]{1,0:T(8,128)}', space=vmem, size = 0x4000, scoped, tag = 'scratch operand']
  %s0 = inlined_call_operand.hbm [shape: bf16[16,16], index: 0, kind: input, shape index: {}]
  %s1 = inlined_call_operand.vmem [shape: bf16[16,192], index: 1, kind: input, shape index: {}]
  %s2 = inlined_call_operand.vmem [shape: f32[1,192], index: 2, kind: input, shape index: {}]
  %s3 = inlined_call_operand.vmem [shape: bf16[32,192], index: 3, kind: input, shape index: {}]
  %s4 = inlined_call_operand.hbm [shape: f32[1,192], index: 4, kind: input, shape index: {}]
  %s5 = inlined_call_operand.vmem [shape: bf16[64,32], index: 5, kind: input, shape index: {}]
  %s6 = inlined_call_operand.vmem [shape: f32[1,32], index: 6, kind: input, shape index: {}]
  %s7 = inlined_call_operand.hbm [shape: f32[8,2,32], index: 7, kind: output, shape index: {0}]
  %s8 = inlined_call_operand.hbm [shape: f32[8,2,32], index: 8, kind: output, shape index: {1}]
  %s9 = inlined_call_operand.hbm [shape: f32[2,32], index: 9, kind: output, shape index: {2}]
  %10 = xla_tuple %s7, %s8, %s9
  %s11 = sld [smem:[#allocation0]]
  $region62: #{tpu_custom_call.1} parent=0
    _
  %s13 = ssub.s32 1, %s11
  %s14 = scalar_select 0, %s13, %s11
  $region1: #{tpu_custom_call.1} parent=0
    #allocation3 [shape = 'u8[4096]{0}', space=vmem, size = 0x1000, scoped, tag = 'input window, operand 0, single buffered']
    #allocation4 [shape = 's32[1]{0}', space=sflag, size = 0x4, scoped, tag = 'scoped memory for tpu_custom_call.1']
    #allocation5 [shape = 's32[1]{0}', space=sflag, size = 0x4, scoped, tag = 'scoped memory for tpu_custom_call.1']
    #allocation6 [shape = 'u8[1024]{0}', space=vmem, size = 0x400, scoped, tag = 'input window, operand 4, single buffered']
    #allocation7 [shape = 's32[1]{0}', space=sflag, size = 0x4, scoped, tag = 'scoped memory for tpu_custom_call.1']
    #allocation8 [shape = 'u8[8192]{0}', space=vmem, size = 0x2000, scoped, tag = 'output window, operand 0, single buffered']
    #allocation9 [shape = 'u8[8192]{0}', space=vmem, size = 0x2000, scoped, tag = 'output window, operand 1, single buffered']
    #allocation10 [shape = 's32[1]{0}', space=sflag, size = 0x4, scoped, tag = 'scoped memory for tpu_custom_call.1']
    #allocation11 [shape = 'u8[1024]{0}', space=vmem, size = 0x400, scoped, tag = 'output window, operand 2, single buffered']
    %15 = vsyncpa [#allocation4], 0
    %16 = vsyncpa [#allocation7], 0
    %17 = vsyncpa [#allocation5], 0
    %18 = vsyncpa [#allocation10], 0
    // Predicated region
    $region2: #{tpu_custom_call.1} parent=1 // pred_check
      _
    $region3: #{tpu_custom_call.1} parent=1 // pred_check_branch
      %20 = sbr.rel (0) target = $region5
    $region4: #{tpu_custom_call.1} parent=1 // pred_region
      %s22 = ssub.s32 128, 128
      %23 = vsyncadd [#allocation4], %s22
      %s24 = sshll.u32 [#allocation3], 4
      %s25 = int_to_ptr.vmem [resolvable:$true] %s24
      %30 = dma.hbm_to_vmem [thread:$0]  %s0, 128, %s25, [#allocation4], 64, 64, 4
    $region5: #{tpu_custom_call.1} parent=1 // pred_fallthru
      _
    // Predicated region
    $region6: #{tpu_custom_call.1} parent=1 // pred_check
      _
    $region7: #{tpu_custom_call.1} parent=1 // pred_check_branch
      %32 = sbr.rel (0) target = $region9
    $region8: #{tpu_custom_call.1} parent=1 // pred_region
      _
    $region9: #{tpu_custom_call.1} parent=1 // pred_fallthru
      _
    // Predicated region
    $region10: #{tpu_custom_call.1} parent=1 // pred_check
      _
    $region11: #{tpu_custom_call.1} parent=1 // pred_check_branch
      %34 = sbr.rel (0) target = $region13
    $region12: #{tpu_custom_call.1} parent=1 // pred_region
      _
    $region13: #{tpu_custom_call.1} parent=1 // pred_fallthru
      _
    // Predicated region
    $region14: #{tpu_custom_call.1} parent=1 // pred_check
      _
    $region15: #{tpu_custom_call.1} parent=1 // pred_check_branch
      %36 = sbr.rel (0) target = $region17
    $region16: #{tpu_custom_call.1} parent=1 // pred_region
      _
    $region17: #{tpu_custom_call.1} parent=1 // pred_fallthru
      _
    // Predicated region
    $region18: #{tpu_custom_call.1} parent=1 // pred_check
      _
    $region19: #{tpu_custom_call.1} parent=1 // pred_check_branch
      %38 = sbr.rel (0) target = $region21
    $region20: #{tpu_custom_call.1} parent=1 // pred_region
      %s40 = ssub.s32 32, 32
      %41 = vsyncadd [#allocation7], %s40
      %s43 = sshll.u32 [#allocation6], 4
      %s44 = int_to_ptr.vmem [resolvable:$true] %s43
      %46 = dma.hbm_to_vmem [thread:$0]  %s4, 32, %s44, [#allocation7]
    $region21: #{tpu_custom_call.1} parent=1 // pred_fallthru
      _
    // Predicated region
    $region22: #{tpu_custom_call.1} parent=1 // pred_check
      _
    $region23: #{tpu_custom_call.1} parent=1 // pred_check_branch
      %48 = sbr.rel (0) target = $region25
    $region24: #{tpu_custom_call.1} parent=1 // pred_region
      _
    $region25: #{tpu_custom_call.1} parent=1 // pred_fallthru
      _
    // Predicated region
    $region26: #{tpu_custom_call.1} parent=1 // pred_check
      _
    $region27: #{tpu_custom_call.1} parent=1 // pred_check_branch
      %50 = sbr.rel (0) target = $region29
    $region28: #{tpu_custom_call.1} parent=1 // pred_region
      _
    $region29: #{tpu_custom_call.1} parent=1 // pred_fallthru
      _
    // Predicated region
    $region30: #{tpu_custom_call.1} parent=1 // pred_check
      _
    $region31: #{tpu_custom_call.1} parent=1 // pred_check_branch
      %52 = sbr.rel (0) target = $region33
    $region32: #{tpu_custom_call.1} parent=1 // pred_region
      %53 = dma.done [#allocation4], 128
    $region33: #{tpu_custom_call.1} parent=1 // pred_fallthru
      _
    // Predicated region
    $region34: #{tpu_custom_call.1} parent=1 // pred_check
      _
    $region35: #{tpu_custom_call.1} parent=1 // pred_check_branch
      %55 = sbr.rel (0) target = $region37
    $region36: #{tpu_custom_call.1} parent=1 // pred_region
      %56 = dma.done [#allocation7], 32
    $region37: #{tpu_custom_call.1} parent=1 // pred_fallthru
      _
    %v58 = vld [vmem:[#allocation3] sm:$0xf]
    %v59 = vld [vmem:[#allocation3 + $0x4] sm:$0xf]
    %v60 = vld [vmem:[%s1] sm:$0xff]
    %v61 = vld [vmem:[%s1 + $0x8] sm:$0xff]
    %v62 = vld [vmem:[%s2] sm:$0x3]
    %v64 = vlaneseq
    %v65 = vshrl.u32 %v64, 7
    %v66 = vsub.s32 0, %v65
    %v67 = vrot.slane %v62, %v66
    %v68 = vlaneseq
    %v69 = vshrl.u32 %v68, 7
    %v70 = vsub.s32 1, %v69
    %v71 = vrot.slane %v62, %v70
    %v76 = vunpack.c.l.b16 %v58
    %v77 = vunpack.c.l.b16 %v59
    %v78 = vpack.c.b16 %v77, %v76
    %v81 = vunpack.c.l.b16 %v60
    %v82 = vunpack.c.h.b16 %v60
    %v83 = vunpack.c.l.b16 %v61
    %v84 = vunpack.c.h.b16 %v61
    %v85 = vpack.c.b16 %v83, %v81
    %v86 = vpack.c.b16 %v84, %v82
    %vm89 = vcmask 130048
    %v91 = vsel %vm89, %v78, 0
    %93 = vmatprep.subr.bf16.mxu0 %v86
    %94 = vmatpush1.bf16.msra.mxu0 %v85
    %95 = vmatprep.subr.bf16.mxu0 0
    %96 = vmatpush1.bf16.msra.mxu0 0
    %97 = vmatprep.subr.bf16.mxu0 0
    %98 = vmatpush1.bf16.msra.mxu0 0
    %99 = vmatprep.subr.bf16.mxu0 0
    %100 = vmatpush1.bf16.msra.mxu0 0
    %101 = vmatprep.subr.bf16.mxu0 0
    %102 = vmatpush1.bf16.msra.mxu0 0
    %103 = vmatprep.subr.bf16.mxu0 0
    %104 = vmatpush1.bf16.msra.mxu0 0
    %105 = vmatprep.subr.bf16.mxu0 0
    %106 = vmatpush1.bf16.msra.mxu0 0
    %107 = vmatprep.subr.bf16.mxu0 0
    %108 = vmatpush1.bf16.msra.mxu0 0
    %109 = vmatprep.subr.bf16.mxu0 0
    %110 = vmatpush1.bf16.msra.mxu0 0
    %111 = vmatprep.subr.bf16.mxu0 0
    %112 = vmatpush1.bf16.msra.mxu0 0
    %113 = vmatprep.subr.bf16.mxu0 0
    %114 = vmatpush1.bf16.msra.mxu0 0
    %115 = vmatprep.subr.bf16.mxu0 0
    %116 = vmatpush1.bf16.msra.mxu0 0
    %117 = vmatprep.subr.bf16.mxu0 0
    %118 = vmatpush1.bf16.msra.mxu0 0
    %119 = vmatprep.subr.bf16.mxu0 0
    %120 = vmatpush1.bf16.msra.mxu0 0
    %121 = vmatprep.subr.bf16.mxu0 0
    %122 = vmatpush1.bf16.msra.mxu0 0
    %123 = vmatprep.subr.bf16.mxu0 0
    %124 = vmatpush1.bf16.msra.mxu0 0
    %125 = vmatprep.mubr.bf16.mxu0 0
    %126 = vmatmul.mubr.bf16.gmra.mrb[0].mxu0 %v91
    %v127 = vpop.f32.mrb[0].mxu0
    %v128 = vadd.f32 %v67, %v127
    %v129 = vpop.f32.mrb[0].mxu0
    %v130 = vadd.f32 %v71, %v129
    %v131 = vpop.f32.mrb[0].mxu0
    %v132 = vadd.f32 %v67, %v131
    %v133 = vpop.f32.mrb[0].mxu0
    %v134 = vadd.f32 %v71, %v133
    %135 = vdwg.mxu0
    %136 = vst [vmem:[#allocation2] sm:$0xff] %v128
    %vm137 = vcmask 523264
    %138 = vst.msk [vmem:[#allocation2 + $0x8] sm:$0xff] %vm137, %v130
    %139 = vst [vmem:[#allocation2 + $0x10] sm:$0xff] %v132
    %140 = vst.msk [vmem:[#allocation2 + $0x18] sm:$0xff] %vm137, %v134
    %v141 = vld [vmem:[%s3] sm:$0xff]
    %v142 = vld [vmem:[%s3 + $0x8] sm:$0xff]
    %v143 = vld [vmem:[%s3 + $0x10] sm:$0xff]
    %v144 = vld [vmem:[%s3 + $0x18] sm:$0xff]
    %v145 = vld [vmem:[#allocation6] sm:$0x3]
    %v146 = vld [vmem:[#allocation2] sm:$0x3]
    %v147 = vld [vmem:[#allocation2 + $0x10] sm:$0xc0]
    %v148 = vld [vmem:[#allocation2 + $0x18] sm:$0xc0]
    %v149 = vpack.c.bf16 0.0, 0.0
    %v151 = vlaneseq
    %v152 = vshrl.u32 %v151, 7
    %v153 = vsub.s32 0, %v152
    %v154 = vrot.slane %v145, %v153
    %v155 = vlaneseq
    %v156 = vshrl.u32 %v155, 7
    %v157 = vsub.s32 1, %v156
    %v158 = vrot.slane %v145, %v157
    %v165 = vunpack.c.l.b16 %v141
    %v166 = vunpack.c.h.b16 %v141
    %v167 = vunpack.c.l.b16 %v142
    %v168 = vunpack.c.h.b16 %v142
    %v169 = vunpack.c.l.b16 %v143
    %v170 = vunpack.c.h.b16 %v143
    %v171 = vunpack.c.l.b16 %v144
    %v172 = vunpack.c.h.b16 %v144
    %v173 = vpack.c.b16 %v167, %v165
    %v174 = vpack.c.b16 %v168, %v166
    %v175 = vpack.c.b16 %v171, %v169
    %v176 = vpack.c.b16 %v172, %v170
    %vm181 = vcmask 261120
    %v183 = vsel %vm181, %v149, 0
    %185 = vmatprep.subr.bf16.mxu0 %v174
    %186 = vmatpush1.bf16.msra.mxu0 %v173
    %187 = vmatprep.subr.bf16.mxu0 %v176
    %188 = vmatpush1.bf16.msra.mxu0 %v175
    %189 = vmatprep.subr.bf16.mxu0 0
    %190 = vmatpush1.bf16.msra.mxu0 0
    %191 = vmatprep.subr.bf16.mxu0 0
    %192 = vmatpush1.bf16.msra.mxu0 0
    %193 = vmatprep.subr.bf16.mxu0 0
    %194 = vmatpush1.bf16.msra.mxu0 0
    %195 = vmatprep.subr.bf16.mxu0 0
    %196 = vmatpush1.bf16.msra.mxu0 0
    %197 = vmatprep.subr.bf16.mxu0 0
    %198 = vmatpush1.bf16.msra.mxu0 0
    %199 = vmatprep.subr.bf16.mxu0 0
    %200 = vmatpush1.bf16.msra.mxu0 0
    %201 = vmatprep.subr.bf16.mxu0 0
    %202 = vmatpush1.bf16.msra.mxu0 0
    %203 = vmatprep.subr.bf16.mxu0 0
    %204 = vmatpush1.bf16.msra.mxu0 0
    %205 = vmatprep.subr.bf16.mxu0 0
    %206 = vmatpush1.bf16.msra.mxu0 0
    %207 = vmatprep.subr.bf16.mxu0 0
    %208 = vmatpush1.bf16.msra.mxu0 0
    %209 = vmatprep.subr.bf16.mxu0 0
    %210 = vmatpush1.bf16.msra.mxu0 0
    %211 = vmatprep.subr.bf16.mxu0 0
    %212 = vmatpush1.bf16.msra.mxu0 0
    %213 = vmatprep.subr.bf16.mxu0 0
    %214 = vmatpush1.bf16.msra.mxu0 0
    %215 = vmatprep.subr.bf16.mxu0 0
    %216 = vmatpush1.bf16.msra.mxu0 0
    %217 = vmatprep.mubr.bf16.mxu0 0
    %218 = vmatmul.mubr.bf16.gmra.mrb[0].mxu0 %v183
    %v219 = vpop.f32.mrb[0].mxu0
    %v220 = vadd.f32 %v154, %v219
    %v221 = vpop.f32.mrb[0].mxu0
    %v222 = vadd.f32 %v158, %v221
    %v223 = vpop.f32.mrb[0].mxu0
    %v224 = vpop.f32.mrb[0].mxu0
    %225 = vdwg.mxu0
    %v226 = vadd.f32 %v146, %v220
    %v227 = vxor.u32 %v226, 2147483648
    %v228 = vmul.f32 %v227, 1.442695
    %v229 = vpow.pop %v228
    %v230 = vadd.f32 %v229, 1.0
    %v231 = vrcp.pop %v230
    %v232 = vmul.f32 1.0, %v231
    %234 = vrot.lane.b32.xlu0 %v220, 64
    %v235 = vpop.permute.xlu0 %234
    %v237 = vmul.f32 %v232, %v235
    %239 = vrot.lane.b32.xlu0 %v237, 64
    %v240 = vpop.permute.xlu0 %239
    %v242 = vadd.f32 %v146, %v240
    %v243 = vtanh.pop %v242
    %v244 = vsub.f32 1.0, %v232
    %246 = vrot.lane.b32.xlu0 %v243, 96
    %v247 = vpop.permute.xlu0 %246
    %v249 = vmul.f32 %v244, %v247
    %v250 = vmul.f32 %v232, 0.0
    %v251 = vadd.f32 %v249, %v250
    %v252 = vrot.slane %v220, 4
    %v254 = vadd.f32 %v147, %v252
    %v255 = vxor.u32 %v254, 2147483648
    %v256 = vmul.f32 %v255, 1.442695
    %v257 = vpow.pop %v256
    %v258 = vadd.f32 %v257, 1.0
    %v259 = vrcp.pop %v258
    %v260 = vmul.f32 1.0, %v259
    %v262 = vrot.slane %v222, 4
    %v264 = vadd.f32 %v148, %v262
    %v265 = vxor.u32 %v264, 2147483648
    %v266 = vmul.f32 %v265, 1.442695
    %v267 = vpow.pop %v266
    %v268 = vadd.f32 %v267, 1.0
    %v269 = vrcp.pop %v268
    %v270 = vmul.f32 1.0, %v269
    %271 = vrot.lane.b32.xlu0 %v262, 64
    %v272 = vpop.permute.xlu0 %271
    %v274 = vmul.f32 %v260, %v272
    %276 = vrot.lane.b32.xlu0 %v274, 64
    %v277 = vpop.permute.xlu0 %276
    %v279 = vadd.f32 %v148, %v277
    %v280 = vtanh.pop %v279
    %v281 = vsub.f32 1.0, %v270
    %283 = vrot.lane.b32.xlu0 %v280, 96
    %v284 = vpop.permute.xlu0 %283
    %v286 = vmul.f32 %v281, %v284
    %v287 = vmul.f32 %v270, 0.0
    %v288 = vadd.f32 %v286, %v287
    %290 = vrot.lane.b32.xlu0 %v251, 96
    %v291 = vpop.permute.xlu0 %290
    %vm293 = vcmask 254976
    %294 = vst.msk [vmem:[#allocation8] sm:$0x3] %vm293, %v291
    %s295 = scalar_lea.vmem [#allocation9], 14
    %vm296 = vcmask 261126
    %297 = vst.msk [vmem:[%s295 - $0x6] sm:$0xc0] %vm296, %v288
    %v298 = vld [vmem:[#allocation2] sm:$0xc]
    %v299 = vld [vmem:[#allocation2 + $0x10] sm:$0x30]
    %v300 = vld [vmem:[#allocation2 + $0x18] sm:$0x30]
    %v302 = vrot.slane %v288, 4
    %303 = vrot.lane.b32.xlu0 %v302, 32
    %v304 = vpop.permute.xlu0 %303
    %vm306 = vcmask 1041408
    %v307 = vsel %vm306, %v251, %v304
    %v308 = vpack.c.bf16 %v307, %v307
    %310 = vrot.lane.b32.xlu0 %v308, 96
    %v311 = vpop.permute.xlu0 %310
    %v313 = vsel %vm181, %v311, 0
    %315 = vmatprep.subr.bf16.mxu0 %v174
    %316 = vmatpush1.bf16.msra.mxu0 %v173
    %317 = vmatprep.subr.bf16.mxu0 %v176
    %318 = vmatpush1.bf16.msra.mxu0 %v175
    %319 = vmatprep.subr.bf16.mxu0 0
    %320 = vmatpush1.bf16.msra.mxu0 0
    %321 = vmatprep.subr.bf16.mxu0 0
    %322 = vmatpush1.bf16.msra.mxu0 0
    %323 = vmatprep.subr.bf16.mxu0 0
    %324 = vmatpush1.bf16.msra.mxu0 0
    %325 = vmatprep.subr.bf16.mxu0 0
    %326 = vmatpush1.bf16.msra.mxu0 0
    %327 = vmatprep.subr.bf16.mxu0 0
    %328 = vmatpush1.bf16.msra.mxu0 0
    %329 = vmatprep.subr.bf16.mxu0 0
    %330 = vmatpush1.bf16.msra.mxu0 0
    %331 = vmatprep.subr.bf16.mxu0 0
    %332 = vmatpush1.bf16.msra.mxu0 0
    %333 = vmatprep.subr.bf16.mxu0 0
    %334 = vmatpush1.bf16.msra.mxu0 0
    %335 = vmatprep.subr.bf16.mxu0 0
    %336 = vmatpush1.bf16.msra.mxu0 0
    %337 = vmatprep.subr.bf16.mxu0 0
    %338 = vmatpush1.bf16.msra.mxu0 0
    %339 = vmatprep.subr.bf16.mxu0 0
    %340 = vmatpush1.bf16.msra.mxu0 0
    %341 = vmatprep.subr.bf16.mxu0 0
    %342 = vmatpush1.bf16.msra.mxu0 0
    %343 = vmatprep.subr.bf16.mxu0 0
    %344 = vmatpush1.bf16.msra.mxu0 0
    %345 = vmatprep.subr.bf16.mxu0 0
    %346 = vmatpush1.bf16.msra.mxu0 0
    %347 = vmatprep.mubr.bf16.mxu0 0
    %348 = vmatmul.mubr.bf16.gmra.mrb[0].mxu0 %v313
    %v349 = vpop.f32.mrb[0].mxu0
    %v350 = vadd.f32 %v154, %v349
    %v351 = vpop.f32.mrb[0].mxu0
    %v352 = vadd.f32 %v158, %v351
    %v353 = vpop.f32.mrb[0].mxu0
    %v354 = vpop.f32.mrb[0].mxu0
    %355 = vdwg.mxu0
    %v357 = vrot.slane %v350, 6
    %v359 = vadd.f32 %v298, %v357
    %v360 = vxor.u32 %v359, 2147483648
    %v361 = vmul.f32 %v360, 1.442695
    %v362 = vpow.pop %v361
    %v363 = vadd.f32 %v362, 1.0
    %v364 = vrcp.pop %v363
    %v365 = vmul.f32 1.0, %v364
    %366 = vrot.lane.b32.xlu0 %v357, 64
    %v367 = vpop.permute.xlu0 %366
    %v369 = vmul.f32 %v365, %v367
    %371 = vrot.lane.b32.xlu0 %v369, 64
    %v372 = vpop.permute.xlu0 %371
    %v374 = vadd.f32 %v298, %v372
    %v375 = vtanh.pop %v374
    %v376 = vsub.f32 1.0, %v365
    %378 = vrot.lane.b32.xlu0 %v375, 96
    %v379 = vpop.permute.xlu0 %378
    %v381 = vmul.f32 %v376, %v379
    %v382 = vrot.slane %v251, 6
    %v384 = vmul.f32 %v365, %v382
    %v385 = vadd.f32 %v381, %v384
    %v386 = vadd.f32 %v299, %v357
    %v387 = vxor.u32 %v386, 2147483648
    %v388 = vmul.f32 %v387, 1.442695
    %v389 = vpow.pop %v388
    %v390 = vadd.f32 %v389, 1.0
    %v391 = vrcp.pop %v390
    %v392 = vmul.f32 1.0, %v391
    %v394 = vrot.slane %v352, 6
    %v396 = vadd.f32 %v300, %v394
    %v397 = vxor.u32 %v396, 2147483648
    %v398 = vmul.f32 %v397, 1.442695
    %v399 = vpow.pop %v398
    %v400 = vadd.f32 %v399, 1.0
    %v401 = vrcp.pop %v400
    %v402 = vmul.f32 1.0, %v401
    %403 = vrot.lane.b32.xlu0 %v394, 64
    %v404 = vpop.permute.xlu0 %403
    %v406 = vmul.f32 %v392, %v404
    %408 = vrot.lane.b32.xlu0 %v406, 64
    %v409 = vpop.permute.xlu0 %408
    %v411 = vadd.f32 %v300, %v409
    %v412 = vtanh.pop %v411
    %v413 = vsub.f32 1.0, %v402
    %415 = vrot.lane.b32.xlu0 %v412, 96
    %v416 = vpop.permute.xlu0 %415
    %v418 = vmul.f32 %v413, %v416
    %v419 = vrot.slane %v288, 2
    %v421 = vmul.f32 %v402, %v419
    %v422 = vadd.f32 %v418, %v421
    %424 = vrot.lane.b32.xlu0 %v385, 96
    %v425 = vpop.permute.xlu0 %424
    %s427 = scalar_lea.vmem [#allocation8], 2
    %vm428 = vcmask 257026
    %429 = vst.msk [vmem:[%s427 - $0x2] sm:$0xc] %vm428, %v425
    %s430 = scalar_lea.vmem [#allocation9], 12
    %vm431 = vcmask 259076
    %432 = vst.msk [vmem:[%s430 - $0x4] sm:$0x30] %vm431, %v422
    %v433 = vld [vmem:[#allocation2] sm:$0x30]
    %v434 = vld [vmem:[#allocation2 + $0x10] sm:$0xc]
    %v435 = vld [vmem:[#allocation2 + $0x18] sm:$0xc]
    %v436 = vrot.slane %v385, 2
    %v439 = vrot.slane %v422, 2
    %440 = vrot.lane.b32.xlu0 %v439, 32
    %v441 = vpop.permute.xlu0 %440
    %v443 = vsel %vm306, %v436, %v441
    %v444 = vpack.c.bf16 %v443, %v443
    %446 = vrot.lane.b32.xlu0 %v444, 96
    %v447 = vpop.permute.xlu0 %446
    %v449 = vsel %vm181, %v447, 0
    %451 = vmatprep.subr.bf16.mxu0 %v174
    %452 = vmatpush1.bf16.msra.mxu0 %v173
    %453 = vmatprep.subr.bf16.mxu0 %v176
    %454 = vmatpush1.bf16.msra.mxu0 %v175
    %455 = vmatprep.subr.bf16.mxu0 0
    %456 = vmatpush1.bf16.msra.mxu0 0
    %457 = vmatprep.subr.bf16.mxu0 0
    %458 = vmatpush1.bf16.msra.mxu0 0
    %459 = vmatprep.subr.bf16.mxu0 0
    %460 = vmatpush1.bf16.msra.mxu0 0
    %461 = vmatprep.subr.bf16.mxu0 0
    %462 = vmatpush1.bf16.msra.mxu0 0
    %463 = vmatprep.subr.bf16.mxu0 0
    %464 = vmatpush1.bf16.msra.mxu0 0
    %465 = vmatprep.subr.bf16.mxu0 0
    %466 = vmatpush1.bf16.msra.mxu0 0
    %467 = vmatprep.subr.bf16.mxu0 0
    %468 = vmatpush1.bf16.msra.mxu0 0
    %469 = vmatprep.subr.bf16.mxu0 0
    %470 = vmatpush1.bf16.msra.mxu0 0
    %471 = vmatprep.subr.bf16.mxu0 0
    %472 = vmatpush1.bf16.msra.mxu0 0
    %473 = vmatprep.subr.bf16.mxu0 0
    %474 = vmatpush1.bf16.msra.mxu0 0
    %475 = vmatprep.subr.bf16.mxu0 0
    %476 = vmatpush1.bf16.msra.mxu0 0
    %477 = vmatprep.subr.bf16.mxu0 0
    %478 = vmatpush1.bf16.msra.mxu0 0
    %479 = vmatprep.subr.bf16.mxu0 0
    %480 = vmatpush1.bf16.msra.mxu0 0
    %481 = vmatprep.subr.bf16.mxu0 0
    %482 = vmatpush1.bf16.msra.mxu0 0
    %483 = vmatprep.mubr.bf16.mxu0 0
    %484 = vmatmul.mubr.bf16.gmra.mrb[0].mxu0 %v449
    %v485 = vpop.f32.mrb[0].mxu0
    %v486 = vadd.f32 %v154, %v485
    %v487 = vpop.f32.mrb[0].mxu0
    %v488 = vadd.f32 %v158, %v487
    %v489 = vpop.f32.mrb[0].mxu0
    %v490 = vpop.f32.mrb[0].mxu0
    %491 = vdwg.mxu0
    %v493 = vrot.slane %v486, 4
    %v495 = vadd.f32 %v433, %v493
    %v496 = vxor.u32 %v495, 2147483648
    %v497 = vmul.f32 %v496, 1.442695
    %v498 = vpow.pop %v497
    %v499 = vadd.f32 %v498, 1.0
    %v500 = vrcp.pop %v499
    %v501 = vmul.f32 1.0, %v500
    %502 = vrot.lane.b32.xlu0 %v493, 64
    %v503 = vpop.permute.xlu0 %502
    %v505 = vmul.f32 %v501, %v503
    %507 = vrot.lane.b32.xlu0 %v505, 64
    %v508 = vpop.permute.xlu0 %507
    %v510 = vadd.f32 %v433, %v508
    %v511 = vtanh.pop %v510
    %v512 = vsub.f32 1.0, %v501
    %514 = vrot.lane.b32.xlu0 %v511, 96
    %v515 = vpop.permute.xlu0 %514
    %v517 = vmul.f32 %v512, %v515
    %v518 = vrot.slane %v385, 6
    %v520 = vmul.f32 %v501, %v518
    %v521 = vadd.f32 %v517, %v520
    %v522 = vadd.f32 %v434, %v486
    %v523 = vxor.u32 %v522, 2147483648
    %v524 = vmul.f32 %v523, 1.442695
    %v525 = vpow.pop %v524
    %v526 = vadd.f32 %v525, 1.0
    %v527 = vrcp.pop %v526
    %v528 = vmul.f32 1.0, %v527
    %v529 = vadd.f32 %v435, %v488
    %v530 = vxor.u32 %v529, 2147483648
    %v531 = vmul.f32 %v530, 1.442695
    %v532 = vpow.pop %v531
    %v533 = vadd.f32 %v532, 1.0
    %v534 = vrcp.pop %v533
    %v535 = vmul.f32 1.0, %v534
    %537 = vrot.lane.b32.xlu0 %v488, 64
    %v538 = vpop.permute.xlu0 %537
    %v540 = vmul.f32 %v528, %v538
    %542 = vrot.lane.b32.xlu0 %v540, 64
    %v543 = vpop.permute.xlu0 %542
    %v545 = vadd.f32 %v435, %v543
    %v546 = vtanh.pop %v545
    %v547 = vsub.f32 1.0, %v535
    %549 = vrot.lane.b32.xlu0 %v546, 96
    %v550 = vpop.permute.xlu0 %549
    %v552 = vmul.f32 %v547, %v550
    %v554 = vmul.f32 %v535, %v439
    %v555 = vadd.f32 %v552, %v554
    %557 = vrot.lane.b32.xlu0 %v521, 96
    %v558 = vpop.permute.xlu0 %557
    %s560 = scalar_lea.vmem [#allocation8], 4
    %561 = vst.msk [vmem:[%s560 - $0x4] sm:$0x30] %vm431, %v558
    %s562 = scalar_lea.vmem [#allocation9], 10
    %563 = vst.msk [vmem:[%s562 - $0x2] sm:$0xc] %vm428, %v555
    %v564 = vld [vmem:[#allocation2] sm:$0xc0]
    %v565 = vld [vmem:[#allocation2 + $0x10] sm:$0x3]
    %v566 = vld [vmem:[#allocation2 + $0x18] sm:$0x3]
    %v567 = vrot.slane %v521, 4
    %570 = vrot.lane.b32.xlu0 %v555, 32
    %v571 = vpop.permute.xlu0 %570
    %v573 = vsel %vm306, %v567, %v571
    %v574 = vpack.c.bf16 %v573, %v573
    %576 = vrot.lane.b32.xlu0 %v574, 96
    %v577 = vpop.permute.xlu0 %576
    %v579 = vsel %vm181, %v577, 0
    %581 = vmatprep.subr.bf16.mxu0 %v174
    %582 = vmatpush1.bf16.msra.mxu0 %v173
    %583 = vmatprep.subr.bf16.mxu0 %v176
    %584 = vmatpush1.bf16.msra.mxu0 %v175
    %585 = vmatprep.subr.bf16.mxu0 0
    %586 = vmatpush1.bf16.msra.mxu0 0
    %587 = vmatprep.subr.bf16.mxu0 0
    %588 = vmatpush1.bf16.msra.mxu0 0
    %589 = vmatprep.subr.bf16.mxu0 0
    %590 = vmatpush1.bf16.msra.mxu0 0
    %591 = vmatprep.subr.bf16.mxu0 0
    %592 = vmatpush1.bf16.msra.mxu0 0
    %593 = vmatprep.subr.bf16.mxu0 0
    %594 = vmatpush1.bf16.msra.mxu0 0
    %595 = vmatprep.subr.bf16.mxu0 0
    %596 = vmatpush1.bf16.msra.mxu0 0
    %597 = vmatprep.subr.bf16.mxu0 0
    %598 = vmatpush1.bf16.msra.mxu0 0
    %599 = vmatprep.subr.bf16.mxu0 0
    %600 = vmatpush1.bf16.msra.mxu0 0
    %601 = vmatprep.subr.bf16.mxu0 0
    %602 = vmatpush1.bf16.msra.mxu0 0
    %603 = vmatprep.subr.bf16.mxu0 0
    %604 = vmatpush1.bf16.msra.mxu0 0
    %605 = vmatprep.subr.bf16.mxu0 0
    %606 = vmatpush1.bf16.msra.mxu0 0
    %607 = vmatprep.subr.bf16.mxu0 0
    %608 = vmatpush1.bf16.msra.mxu0 0
    %609 = vmatprep.subr.bf16.mxu0 0
    %610 = vmatpush1.bf16.msra.mxu0 0
    %611 = vmatprep.subr.bf16.mxu0 0
    %612 = vmatpush1.bf16.msra.mxu0 0
    %613 = vmatprep.mubr.bf16.mxu0 0
    %614 = vmatmul.mubr.bf16.gmra.mrb[0].mxu0 %v579
    %v615 = vpop.f32.mrb[0].mxu0
    %v616 = vadd.f32 %v154, %v615
    %v617 = vpop.f32.mrb[0].mxu0
    %v618 = vadd.f32 %v158, %v617
    %v619 = vpop.f32.mrb[0].mxu0
    %v620 = vpop.f32.mrb[0].mxu0
    %621 = vdwg.mxu0
    %v623 = vrot.slane %v616, 2
    %v625 = vadd.f32 %v564, %v623
    %v626 = vxor.u32 %v625, 2147483648
    %v627 = vmul.f32 %v626, 1.442695
    %v628 = vpow.pop %v627
    %v629 = vadd.f32 %v628, 1.0
    %v630 = vrcp.pop %v629
    %v631 = vmul.f32 1.0, %v630
    %632 = vrot.lane.b32.xlu0 %v623, 64
    %v633 = vpop.permute.xlu0 %632
    %v635 = vmul.f32 %v631, %v633
    %637 = vrot.lane.b32.xlu0 %v635, 64
    %v638 = vpop.permute.xlu0 %637
    %v640 = vadd.f32 %v564, %v638
    %v641 = vtanh.pop %v640
    %v642 = vsub.f32 1.0, %v631
    %644 = vrot.lane.b32.xlu0 %v641, 96
    %v645 = vpop.permute.xlu0 %644
    %v647 = vmul.f32 %v642, %v645
    %v648 = vrot.slane %v521, 6
    %v650 = vmul.f32 %v631, %v648
    %v651 = vadd.f32 %v647, %v650
    %v652 = vadd.f32 %v565, %v623
    %v653 = vxor.u32 %v652, 2147483648
    %v654 = vmul.f32 %v653, 1.442695
    %v655 = vpow.pop %v654
    %v656 = vadd.f32 %v655, 1.0
    %v657 = vrcp.pop %v656
    %v658 = vmul.f32 1.0, %v657
    %v660 = vrot.slane %v618, 2
    %v662 = vadd.f32 %v566, %v660
    %v663 = vxor.u32 %v662, 2147483648
    %v664 = vmul.f32 %v663, 1.442695
    %v665 = vpow.pop %v664
    %v666 = vadd.f32 %v665, 1.0
    %v667 = vrcp.pop %v666
    %v668 = vmul.f32 1.0, %v667
    %669 = vrot.lane.b32.xlu0 %v660, 64
    %v670 = vpop.permute.xlu0 %669
    %v672 = vmul.f32 %v658, %v670
    %674 = vrot.lane.b32.xlu0 %v672, 64
    %v675 = vpop.permute.xlu0 %674
    %v677 = vadd.f32 %v566, %v675
    %v678 = vtanh.pop %v677
    %v679 = vsub.f32 1.0, %v668
    %681 = vrot.lane.b32.xlu0 %v678, 96
    %v682 = vpop.permute.xlu0 %681
    %v684 = vmul.f32 %v679, %v682
    %v685 = vrot.slane %v555, 2
    %v687 = vmul.f32 %v668, %v685
    %v688 = vadd.f32 %v684, %v687
    %690 = vrot.lane.b32.xlu0 %v651, 96
    %v691 = vpop.permute.xlu0 %690
    %s693 = scalar_lea.vmem [#allocation8], 6
    %694 = vst.msk [vmem:[%s693 - $0x6] sm:$0xc0] %vm296, %v691
    %s695 = scalar_lea.vmem [#allocation9], 8
    %696 = vst.msk [vmem:[%s695] sm:$0x3] %vm293, %v688
    %v697 = vld [vmem:[#allocation2 + $0x10] sm:$0x3]
    %v698 = vld [vmem:[#allocation2] sm:$0xc0]
    %v699 = vld [vmem:[#allocation2 + $0x8] sm:$0xc0]
    %v700 = vrot.slane %v651, 6
    %v703 = vrot.slane %v688, 6
    %704 = vrot.lane.b32.xlu0 %v703, 32
    %v705 = vpop.permute.xlu0 %704
    %v707 = vsel %vm306, %v700, %v705
    %v708 = vpack.c.bf16 %v707, %v707
    %710 = vrot.lane.b32.xlu0 %v708, 96
    %v711 = vpop.permute.xlu0 %710
    %v713 = vsel %vm181, %v711, 0
    %715 = vmatprep.subr.bf16.mxu0 %v174
    %716 = vmatpush1.bf16.msra.mxu0 %v173
    %717 = vmatprep.subr.bf16.mxu0 %v176
    %718 = vmatpush1.bf16.msra.mxu0 %v175
    %719 = vmatprep.subr.bf16.mxu0 0
    %720 = vmatpush1.bf16.msra.mxu0 0
    %721 = vmatprep.subr.bf16.mxu0 0
    %722 = vmatpush1.bf16.msra.mxu0 0
    %723 = vmatprep.subr.bf16.mxu0 0
    %724 = vmatpush1.bf16.msra.mxu0 0
    %725 = vmatprep.subr.bf16.mxu0 0
    %726 = vmatpush1.bf16.msra.mxu0 0
    %727 = vmatprep.subr.bf16.mxu0 0
    %728 = vmatpush1.bf16.msra.mxu0 0
    %729 = vmatprep.subr.bf16.mxu0 0
    %730 = vmatpush1.bf16.msra.mxu0 0
    %731 = vmatprep.subr.bf16.mxu0 0
    %732 = vmatpush1.bf16.msra.mxu0 0
    %733 = vmatprep.subr.bf16.mxu0 0
    %734 = vmatpush1.bf16.msra.mxu0 0
    %735 = vmatprep.subr.bf16.mxu0 0
    %736 = vmatpush1.bf16.msra.mxu0 0
    %737 = vmatprep.subr.bf16.mxu0 0
    %738 = vmatpush1.bf16.msra.mxu0 0
    %739 = vmatprep.subr.bf16.mxu0 0
    %740 = vmatpush1.bf16.msra.mxu0 0
    %741 = vmatprep.subr.bf16.mxu0 0
    %742 = vmatpush1.bf16.msra.mxu0 0
    %743 = vmatprep.subr.bf16.mxu0 0
    %744 = vmatpush1.bf16.msra.mxu0 0
    %745 = vmatprep.subr.bf16.mxu0 0
    %746 = vmatpush1.bf16.msra.mxu0 0
    %747 = vmatprep.mubr.bf16.mxu0 0
    %748 = vmatmul.mubr.bf16.gmra.mrb[0].mxu0 %v713
    %v749 = vpop.f32.mrb[0].mxu0
    %v750 = vadd.f32 %v154, %v749
    %v751 = vpop.f32.mrb[0].mxu0
    %v752 = vadd.f32 %v158, %v751
    %v753 = vpop.f32.mrb[0].mxu0
    %v754 = vpop.f32.mrb[0].mxu0
    %755 = vdwg.mxu0
    %v756 = vadd.f32 %v697, %v750
    %v757 = vxor.u32 %v756, 2147483648
    %v758 = vmul.f32 %v757, 1.442695
    %v759 = vpow.pop %v758
    %v760 = vadd.f32 %v759, 1.0
    %v761 = vrcp.pop %v760
    %v762 = vmul.f32 1.0, %v761
    %764 = vrot.lane.b32.xlu0 %v750, 64
    %v765 = vpop.permute.xlu0 %764
    %v767 = vmul.f32 %v762, %v765
    %769 = vrot.lane.b32.xlu0 %v767, 64
    %v770 = vpop.permute.xlu0 %769
    %v772 = vadd.f32 %v697, %v770
    %v773 = vtanh.pop %v772
    %v774 = vsub.f32 1.0, %v762
    %776 = vrot.lane.b32.xlu0 %v773, 96
    %v777 = vpop.permute.xlu0 %776
    %v779 = vmul.f32 %v774, %v777
    %v780 = vmul.f32 %v762, %v700
    %v781 = vadd.f32 %v779, %v780
    %v782 = vrot.slane %v750, 4
    %v784 = vadd.f32 %v698, %v782
    %v785 = vxor.u32 %v784, 2147483648
    %v786 = vmul.f32 %v785, 1.442695
    %v787 = vpow.pop %v786
    %v788 = vadd.f32 %v787, 1.0
    %v789 = vrcp.pop %v788
    %v790 = vmul.f32 1.0, %v789
    %v792 = vrot.slane %v752, 4
    %v794 = vadd.f32 %v699, %v792
    %v795 = vxor.u32 %v794, 2147483648
    %v796 = vmul.f32 %v795, 1.442695
    %v797 = vpow.pop %v796
    %v798 = vadd.f32 %v797, 1.0
    %v799 = vrcp.pop %v798
    %v800 = vmul.f32 1.0, %v799
    %801 = vrot.lane.b32.xlu0 %v792, 64
    %v802 = vpop.permute.xlu0 %801
    %v804 = vmul.f32 %v790, %v802
    %806 = vrot.lane.b32.xlu0 %v804, 64
    %v807 = vpop.permute.xlu0 %806
    %v809 = vadd.f32 %v699, %v807
    %v810 = vtanh.pop %v809
    %v811 = vsub.f32 1.0, %v800
    %813 = vrot.lane.b32.xlu0 %v810, 96
    %v814 = vpop.permute.xlu0 %813
    %v816 = vmul.f32 %v811, %v814
    %v817 = vrot.slane %v688, 2
    %v819 = vmul.f32 %v800, %v817
    %v820 = vadd.f32 %v816, %v819
    %822 = vrot.lane.b32.xlu0 %v781, 96
    %v823 = vpop.permute.xlu0 %822
    %s825 = scalar_lea.vmem [#allocation8], 8
    %826 = vst.msk [vmem:[%s825] sm:$0x3] %vm293, %v823
    %s827 = scalar_lea.vmem [#allocation9], 6
    %828 = vst.msk [vmem:[%s827 - $0x6] sm:$0xc0] %vm296, %v820
    %v829 = vld [vmem:[#allocation2 + $0x10] sm:$0xc]
    %v830 = vld [vmem:[#allocation2] sm:$0x30]
    %v831 = vld [vmem:[#allocation2 + $0x8] sm:$0x30]
    %v833 = vrot.slane %v820, 4
    %834 = vrot.lane.b32.xlu0 %v833, 32
    %v835 = vpop.permute.xlu0 %834
    %v837 = vsel %vm306, %v781, %v835
    %v838 = vpack.c.bf16 %v837, %v837
    %840 = vrot.lane.b32.xlu0 %v838, 96
    %v841 = vpop.permute.xlu0 %840
    %v843 = vsel %vm181, %v841, 0
    %845 = vmatprep.subr.bf16.mxu0 %v174
    %846 = vmatpush1.bf16.msra.mxu0 %v173
    %847 = vmatprep.subr.bf16.mxu0 %v176
    %848 = vmatpush1.bf16.msra.mxu0 %v175
    %849 = vmatprep.subr.bf16.mxu0 0
    %850 = vmatpush1.bf16.msra.mxu0 0
    %851 = vmatprep.subr.bf16.mxu0 0
    %852 = vmatpush1.bf16.msra.mxu0 0
    %853 = vmatprep.subr.bf16.mxu0 0
    %854 = vmatpush1.bf16.msra.mxu0 0
    %855 = vmatprep.subr.bf16.mxu0 0
    %856 = vmatpush1.bf16.msra.mxu0 0
    %857 = vmatprep.subr.bf16.mxu0 0
    %858 = vmatpush1.bf16.msra.mxu0 0
    %859 = vmatprep.subr.bf16.mxu0 0
    %860 = vmatpush1.bf16.msra.mxu0 0
    %861 = vmatprep.subr.bf16.mxu0 0
    %862 = vmatpush1.bf16.msra.mxu0 0
    %863 = vmatprep.subr.bf16.mxu0 0
    %864 = vmatpush1.bf16.msra.mxu0 0
    %865 = vmatprep.subr.bf16.mxu0 0
    %866 = vmatpush1.bf16.msra.mxu0 0
    %867 = vmatprep.subr.bf16.mxu0 0
    %868 = vmatpush1.bf16.msra.mxu0 0
    %869 = vmatprep.subr.bf16.mxu0 0
    %870 = vmatpush1.bf16.msra.mxu0 0
    %871 = vmatprep.subr.bf16.mxu0 0
    %872 = vmatpush1.bf16.msra.mxu0 0
    %873 = vmatprep.subr.bf16.mxu0 0
    %874 = vmatpush1.bf16.msra.mxu0 0
    %875 = vmatprep.subr.bf16.mxu0 0
    %876 = vmatpush1.bf16.msra.mxu0 0
    %877 = vmatprep.mubr.bf16.mxu0 0
    %878 = vmatmul.mubr.bf16.gmra.mrb[0].mxu0 %v843
    %v879 = vpop.f32.mrb[0].mxu0
    %v880 = vadd.f32 %v154, %v879
    %v881 = vpop.f32.mrb[0].mxu0
    %v882 = vadd.f32 %v158, %v881
    %v883 = vpop.f32.mrb[0].mxu0
    %v884 = vpop.f32.mrb[0].mxu0
    %885 = vdwg.mxu0
    %v887 = vrot.slane %v880, 6
    %v889 = vadd.f32 %v829, %v887
    %v890 = vxor.u32 %v889, 2147483648
    %v891 = vmul.f32 %v890, 1.442695
    %v892 = vpow.pop %v891
    %v893 = vadd.f32 %v892, 1.0
    %v894 = vrcp.pop %v893
    %v895 = vmul.f32 1.0, %v894
    %896 = vrot.lane.b32.xlu0 %v887, 64
    %v897 = vpop.permute.xlu0 %896
    %v899 = vmul.f32 %v895, %v897
    %901 = vrot.lane.b32.xlu0 %v899, 64
    %v902 = vpop.permute.xlu0 %901
    %v904 = vadd.f32 %v829, %v902
    %v905 = vtanh.pop %v904
    %v906 = vsub.f32 1.0, %v895
    %908 = vrot.lane.b32.xlu0 %v905, 96
    %v909 = vpop.permute.xlu0 %908
    %v911 = vmul.f32 %v906, %v909
    %v912 = vrot.slane %v781, 6
    %v914 = vmul.f32 %v895, %v912
    %v915 = vadd.f32 %v911, %v914
    %v916 = vadd.f32 %v830, %v887
    %v917 = vxor.u32 %v916, 2147483648
    %v918 = vmul.f32 %v917, 1.442695
    %v919 = vpow.pop %v918
    %v920 = vadd.f32 %v919, 1.0
    %v921 = vrcp.pop %v920
    %v922 = vmul.f32 1.0, %v921
    %v924 = vrot.slane %v882, 6
    %v926 = vadd.f32 %v831, %v924
    %v927 = vxor.u32 %v926, 2147483648
    %v928 = vmul.f32 %v927, 1.442695
    %v929 = vpow.pop %v928
    %v930 = vadd.f32 %v929, 1.0
    %v931 = vrcp.pop %v930
    %v932 = vmul.f32 1.0, %v931
    %933 = vrot.lane.b32.xlu0 %v924, 64
    %v934 = vpop.permute.xlu0 %933
    %v936 = vmul.f32 %v922, %v934
    %938 = vrot.lane.b32.xlu0 %v936, 64
    %v939 = vpop.permute.xlu0 %938
    %v941 = vadd.f32 %v831, %v939
    %v942 = vtanh.pop %v941
    %v943 = vsub.f32 1.0, %v932
    %945 = vrot.lane.b32.xlu0 %v942, 96
    %v946 = vpop.permute.xlu0 %945
    %v948 = vmul.f32 %v943, %v946
    %v949 = vrot.slane %v820, 2
    %v951 = vmul.f32 %v932, %v949
    %v952 = vadd.f32 %v948, %v951
    %954 = vrot.lane.b32.xlu0 %v915, 96
    %v955 = vpop.permute.xlu0 %954
    %s957 = scalar_lea.vmem [#allocation8], 10
    %958 = vst.msk [vmem:[%s957 - $0x2] sm:$0xc] %vm428, %v955
    %s959 = scalar_lea.vmem [#allocation9], 4
    %960 = vst.msk [vmem:[%s959 - $0x4] sm:$0x30] %vm431, %v952
    %v961 = vld [vmem:[#allocation2 + $0x10] sm:$0x30]
    %v962 = vld [vmem:[#allocation2] sm:$0xc]
    %v963 = vld [vmem:[#allocation2 + $0x8] sm:$0xc]
    %v964 = vrot.slane %v915, 2
    %v967 = vrot.slane %v952, 2
    %968 = vrot.lane.b32.xlu0 %v967, 32
    %v969 = vpop.permute.xlu0 %968
    %v971 = vsel %vm306, %v964, %v969
    %v972 = vpack.c.bf16 %v971, %v971
    %974 = vrot.lane.b32.xlu0 %v972, 96
    %v975 = vpop.permute.xlu0 %974
    %v977 = vsel %vm181, %v975, 0
    %979 = vmatprep.subr.bf16.mxu0 %v174
    %980 = vmatpush1.bf16.msra.mxu0 %v173
    %981 = vmatprep.subr.bf16.mxu0 %v176
    %982 = vmatpush1.bf16.msra.mxu0 %v175
    %983 = vmatprep.subr.bf16.mxu0 0
    %984 = vmatpush1.bf16.msra.mxu0 0
    %985 = vmatprep.subr.bf16.mxu0 0
    %986 = vmatpush1.bf16.msra.mxu0 0
    %987 = vmatprep.subr.bf16.mxu0 0
    %988 = vmatpush1.bf16.msra.mxu0 0
    %989 = vmatprep.subr.bf16.mxu0 0
    %990 = vmatpush1.bf16.msra.mxu0 0
    %991 = vmatprep.subr.bf16.mxu0 0
    %992 = vmatpush1.bf16.msra.mxu0 0
    %993 = vmatprep.subr.bf16.mxu0 0
    %994 = vmatpush1.bf16.msra.mxu0 0
    %995 = vmatprep.subr.bf16.mxu0 0
    %996 = vmatpush1.bf16.msra.mxu0 0
    %997 = vmatprep.subr.bf16.mxu0 0
    %998 = vmatpush1.bf16.msra.mxu0 0
    %999 = vmatprep.subr.bf16.mxu0 0
    %1000 = vmatpush1.bf16.msra.mxu0 0
    %1001 = vmatprep.subr.bf16.mxu0 0
    %1002 = vmatpush1.bf16.msra.mxu0 0
    %1003 = vmatprep.subr.bf16.mxu0 0
    %1004 = vmatpush1.bf16.msra.mxu0 0
    %1005 = vmatprep.subr.bf16.mxu0 0
    %1006 = vmatpush1.bf16.msra.mxu0 0
    %1007 = vmatprep.subr.bf16.mxu0 0
    %1008 = vmatpush1.bf16.msra.mxu0 0
    %1009 = vmatprep.subr.bf16.mxu0 0
    %1010 = vmatpush1.bf16.msra.mxu0 0
    %1011 = vmatprep.mubr.bf16.mxu0 0
    %1012 = vmatmul.mubr.bf16.gmra.mrb[0].mxu0 %v977
    %v1013 = vpop.f32.mrb[0].mxu0
    %v1014 = vadd.f32 %v154, %v1013
    %v1015 = vpop.f32.mrb[0].mxu0
    %v1016 = vadd.f32 %v158, %v1015
    %v1017 = vpop.f32.mrb[0].mxu0
    %v1018 = vpop.f32.mrb[0].mxu0
    %1019 = vdwg.mxu0
    %v1021 = vrot.slane %v1014, 4
    %v1023 = vadd.f32 %v961, %v1021
    %v1024 = vxor.u32 %v1023, 2147483648
    %v1025 = vmul.f32 %v1024, 1.442695
    %v1026 = vpow.pop %v1025
    %v1027 = vadd.f32 %v1026, 1.0
    %v1028 = vrcp.pop %v1027
    %v1029 = vmul.f32 1.0, %v1028
    %1030 = vrot.lane.b32.xlu0 %v1021, 64
    %v1031 = vpop.permute.xlu0 %1030
    %v1033 = vmul.f32 %v1029, %v1031
    %1035 = vrot.lane.b32.xlu0 %v1033, 64
    %v1036 = vpop.permute.xlu0 %1035
    %v1038 = vadd.f32 %v961, %v1036
    %v1039 = vtanh.pop %v1038
    %v1040 = vsub.f32 1.0, %v1029
    %1042 = vrot.lane.b32.xlu0 %v1039, 96
    %v1043 = vpop.permute.xlu0 %1042
    %v1045 = vmul.f32 %v1040, %v1043
    %v1046 = vrot.slane %v915, 6
    %v1048 = vmul.f32 %v1029, %v1046
    %v1049 = vadd.f32 %v1045, %v1048
    %v1050 = vadd.f32 %v962, %v1014
    %v1051 = vxor.u32 %v1050, 2147483648
    %v1052 = vmul.f32 %v1051, 1.442695
    %v1053 = vpow.pop %v1052
    %v1054 = vadd.f32 %v1053, 1.0
    %v1055 = vrcp.pop %v1054
    %v1056 = vmul.f32 1.0, %v1055
    %v1057 = vadd.f32 %v963, %v1016
    %v1058 = vxor.u32 %v1057, 2147483648
    %v1059 = vmul.f32 %v1058, 1.442695
    %v1060 = vpow.pop %v1059
    %v1061 = vadd.f32 %v1060, 1.0
    %v1062 = vrcp.pop %v1061
    %v1063 = vmul.f32 1.0, %v1062
    %1065 = vrot.lane.b32.xlu0 %v1016, 64
    %v1066 = vpop.permute.xlu0 %1065
    %v1068 = vmul.f32 %v1056, %v1066
    %1070 = vrot.lane.b32.xlu0 %v1068, 64
    %v1071 = vpop.permute.xlu0 %1070
    %v1073 = vadd.f32 %v963, %v1071
    %v1074 = vtanh.pop %v1073
    %v1075 = vsub.f32 1.0, %v1063
    %1077 = vrot.lane.b32.xlu0 %v1074, 96
    %v1078 = vpop.permute.xlu0 %1077
    %v1080 = vmul.f32 %v1075, %v1078
    %v1082 = vmul.f32 %v1063, %v967
    %v1083 = vadd.f32 %v1080, %v1082
    %1085 = vrot.lane.b32.xlu0 %v1049, 96
    %v1086 = vpop.permute.xlu0 %1085
    %s1088 = scalar_lea.vmem [#allocation8], 12
    %1089 = vst.msk [vmem:[%s1088 - $0x4] sm:$0x30] %vm431, %v1086
    %s1090 = scalar_lea.vmem [#allocation9], 2
    %1091 = vst.msk [vmem:[%s1090 - $0x2] sm:$0xc] %vm428, %v1083
    %v1092 = vld [vmem:[#allocation2 + $0x10] sm:$0xc0]
    %v1093 = vld [vmem:[#allocation2] sm:$0x3]
    %v1094 = vld [vmem:[#allocation2 + $0x8] sm:$0x3]
    %v1095 = vrot.slane %v1049, 4
    %1098 = vrot.lane.b32.xlu0 %v1083, 32
    %v1099 = vpop.permute.xlu0 %1098
    %v1101 = vsel %vm306, %v1095, %v1099
    %v1102 = vpack.c.bf16 %v1101, %v1101
    %1104 = vrot.lane.b32.xlu0 %v1102, 96
    %v1105 = vpop.permute.xlu0 %1104
    %v1107 = vsel %vm181, %v1105, 0
    %1109 = vmatprep.subr.bf16.mxu0 %v174
    %1110 = vmatpush1.bf16.msra.mxu0 %v173
    %1111 = vmatprep.subr.bf16.mxu0 %v176
    %1112 = vmatpush1.bf16.msra.mxu0 %v175
    %1113 = vmatprep.subr.bf16.mxu0 0
    %1114 = vmatpush1.bf16.msra.mxu0 0
    %1115 = vmatprep.subr.bf16.mxu0 0
    %1116 = vmatpush1.bf16.msra.mxu0 0
    %1117 = vmatprep.subr.bf16.mxu0 0
    %1118 = vmatpush1.bf16.msra.mxu0 0
    %1119 = vmatprep.subr.bf16.mxu0 0
    %1120 = vmatpush1.bf16.msra.mxu0 0
    %1121 = vmatprep.subr.bf16.mxu0 0
    %1122 = vmatpush1.bf16.msra.mxu0 0
    %1123 = vmatprep.subr.bf16.mxu0 0
    %1124 = vmatpush1.bf16.msra.mxu0 0
    %1125 = vmatprep.subr.bf16.mxu0 0
    %1126 = vmatpush1.bf16.msra.mxu0 0
    %1127 = vmatprep.subr.bf16.mxu0 0
    %1128 = vmatpush1.bf16.msra.mxu0 0
    %1129 = vmatprep.subr.bf16.mxu0 0
    %1130 = vmatpush1.bf16.msra.mxu0 0
    %1131 = vmatprep.subr.bf16.mxu0 0
    %1132 = vmatpush1.bf16.msra.mxu0 0
    %1133 = vmatprep.subr.bf16.mxu0 0
    %1134 = vmatpush1.bf16.msra.mxu0 0
    %1135 = vmatprep.subr.bf16.mxu0 0
    %1136 = vmatpush1.bf16.msra.mxu0 0
    %1137 = vmatprep.subr.bf16.mxu0 0
    %1138 = vmatpush1.bf16.msra.mxu0 0
    %1139 = vmatprep.subr.bf16.mxu0 0
    %1140 = vmatpush1.bf16.msra.mxu0 0
    %1141 = vmatprep.mubr.bf16.mxu0 0
    %1142 = vmatmul.mubr.bf16.gmra.mrb[0].mxu0 %v1107
    %v1143 = vpop.f32.mrb[0].mxu0
    %v1144 = vadd.f32 %v154, %v1143
    %v1145 = vpop.f32.mrb[0].mxu0
    %v1146 = vadd.f32 %v158, %v1145
    %v1147 = vpop.f32.mrb[0].mxu0
    %v1148 = vpop.f32.mrb[0].mxu0
    %1149 = vdwg.mxu0
    %v1151 = vrot.slane %v1144, 2
    %v1153 = vadd.f32 %v1092, %v1151
    %v1154 = vxor.u32 %v1153, 2147483648
    %v1155 = vmul.f32 %v1154, 1.442695
    %v1156 = vpow.pop %v1155
    %v1157 = vadd.f32 %v1156, 1.0
    %v1158 = vrcp.pop %v1157
    %v1159 = vmul.f32 1.0, %v1158
    %1160 = vrot.lane.b32.xlu0 %v1151, 64
    %v1161 = vpop.permute.xlu0 %1160
    %v1163 = vmul.f32 %v1159, %v1161
    %1165 = vrot.lane.b32.xlu0 %v1163, 64
    %v1166 = vpop.permute.xlu0 %1165
    %v1168 = vadd.f32 %v1092, %v1166
    %v1169 = vtanh.pop %v1168
    %v1170 = vsub.f32 1.0, %v1159
    %1172 = vrot.lane.b32.xlu0 %v1169, 96
    %v1173 = vpop.permute.xlu0 %1172
    %v1175 = vmul.f32 %v1170, %v1173
    %v1176 = vrot.slane %v1049, 6
    %v1178 = vmul.f32 %v1159, %v1176
    %v1179 = vadd.f32 %v1175, %v1178
    %v1180 = vadd.f32 %v1093, %v1151
    %v1181 = vxor.u32 %v1180, 2147483648
    %v1182 = vmul.f32 %v1181, 1.442695
    %v1183 = vpow.pop %v1182
    %v1184 = vadd.f32 %v1183, 1.0
    %v1185 = vrcp.pop %v1184
    %v1186 = vmul.f32 1.0, %v1185
    %v1188 = vrot.slane %v1146, 2
    %v1190 = vadd.f32 %v1094, %v1188
    %v1191 = vxor.u32 %v1190, 2147483648
    %v1192 = vmul.f32 %v1191, 1.442695
    %v1193 = vpow.pop %v1192
    %v1194 = vadd.f32 %v1193, 1.0
    %v1195 = vrcp.pop %v1194
    %v1196 = vmul.f32 1.0, %v1195
    %1197 = vrot.lane.b32.xlu0 %v1188, 64
    %v1198 = vpop.permute.xlu0 %1197
    %v1200 = vmul.f32 %v1186, %v1198
    %1202 = vrot.lane.b32.xlu0 %v1200, 64
    %v1203 = vpop.permute.xlu0 %1202
    %v1205 = vadd.f32 %v1094, %v1203
    %v1206 = vtanh.pop %v1205
    %v1207 = vsub.f32 1.0, %v1196
    %1209 = vrot.lane.b32.xlu0 %v1206, 96
    %v1210 = vpop.permute.xlu0 %1209
    %v1212 = vmul.f32 %v1207, %v1210
    %v1213 = vrot.slane %v1083, 2
    %v1215 = vmul.f32 %v1196, %v1213
    %v1216 = vadd.f32 %v1212, %v1215
    %1218 = vrot.lane.b32.xlu0 %v1179, 96
    %v1219 = vpop.permute.xlu0 %1218
    %s1221 = scalar_lea.vmem [#allocation8], 14
    %1222 = vst.msk [vmem:[%s1221 - $0x6] sm:$0xc0] %vm296, %v1219
    %1223 = vst.msk [vmem:[#allocation9] sm:$0x3] %vm293, %v1216
    %v1225 = vrot.slane %v1216, 2
    %1226 = vrot.lane.b32.xlu0 %v1225, 32
    %v1227 = vpop.permute.xlu0 %1226
    %v1229 = vsel %vm181, %v1219, %v1227
    %v1230 = vpack.c.bf16 %v1229, %v1229
    %v1231 = vld [vmem:[%s5] sm:$0xf]
    %v1232 = vld [vmem:[%s5 + $0x4] sm:$0xf]
    %v1233 = vld [vmem:[%s5 + $0x8] sm:$0xf]
    %v1234 = vld [vmem:[%s5 + $0xc] sm:$0xf]
    %v1235 = vld [vmem:[%s5 + $0x10] sm:$0xf]
    %v1236 = vld [vmem:[%s5 + $0x14] sm:$0xf]
    %v1237 = vld [vmem:[%s5 + $0x18] sm:$0xf]
    %v1238 = vld [vmem:[%s5 + $0x1c] sm:$0xf]
    %v1239 = vld [vmem:[%s6] sm:$0x1]
    %v1241 = vlaneseq
    %v1242 = vshrl.u32 %v1241, 7
    %v1243 = vsub.s32 0, %v1242
    %v1244 = vrot.slane %v1239, %v1243
    %v1247 = vrot.slane %v1230, 3
    %v1256 = vunpack.c.l.b16 %v1231
    %v1257 = vunpack.c.l.b16 %v1232
    %v1258 = vunpack.c.l.b16 %v1233
    %v1259 = vunpack.c.l.b16 %v1234
    %v1260 = vunpack.c.l.b16 %v1235
    %v1261 = vunpack.c.l.b16 %v1236
    %v1262 = vunpack.c.l.b16 %v1237
    %v1263 = vunpack.c.l.b16 %v1238
    %v1264 = vpack.c.b16 %v1257, %v1256
    %v1265 = vpack.c.b16 %v1259, %v1258
    %v1266 = vpack.c.b16 %v1261, %v1260
    %v1267 = vpack.c.b16 %v1263, %v1262
    %v1273 = vsel %vm137, %v1247, 0
    %1275 = vmatprep.subr.bf16.mxu0 0
    %1276 = vmatpush1.bf16.msra.mxu0 %v1264
    %1277 = vmatprep.subr.bf16.mxu0 0
    %1278 = vmatpush1.bf16.msra.mxu0 %v1265
    %1279 = vmatprep.subr.bf16.mxu0 0
    %1280 = vmatpush1.bf16.msra.mxu0 %v1266
    %1281 = vmatprep.subr.bf16.mxu0 0
    %1282 = vmatpush1.bf16.msra.mxu0 %v1267
    %1283 = vmatprep.subr.bf16.mxu0 0
    %1284 = vmatpush1.bf16.msra.mxu0 0
    %1285 = vmatprep.subr.bf16.mxu0 0
    %1286 = vmatpush1.bf16.msra.mxu0 0
    %1287 = vmatprep.subr.bf16.mxu0 0
    %1288 = vmatpush1.bf16.msra.mxu0 0
    %1289 = vmatprep.subr.bf16.mxu0 0
    %1290 = vmatpush1.bf16.msra.mxu0 0
    %1291 = vmatprep.subr.bf16.mxu0 0
    %1292 = vmatpush1.bf16.msra.mxu0 0
    %1293 = vmatprep.subr.bf16.mxu0 0
    %1294 = vmatpush1.bf16.msra.mxu0 0
    %1295 = vmatprep.subr.bf16.mxu0 0
    %1296 = vmatpush1.bf16.msra.mxu0 0
    %1297 = vmatprep.subr.bf16.mxu0 0
    %1298 = vmatpush1.bf16.msra.mxu0 0
    %1299 = vmatprep.subr.bf16.mxu0 0
    %1300 = vmatpush1.bf16.msra.mxu0 0
    %1301 = vmatprep.subr.bf16.mxu0 0
    %1302 = vmatpush1.bf16.msra.mxu0 0
    %1303 = vmatprep.subr.bf16.mxu0 0
    %1304 = vmatpush1.bf16.msra.mxu0 0
    %1305 = vmatprep.subr.bf16.mxu0 0
    %1306 = vmatpush1.bf16.msra.mxu0 0
    %1307 = vmatprep.mubr.bf16.mxu0 0
    %1308 = vmatmul.mubr.bf16.gmra.mrb[0].mxu0 %v1273
    %v1309 = vpop.f32.mrb[0].mxu0
    %v1310 = vadd.f32 %v1244, %v1309
    %v1311 = vpop.f32.mrb[0].mxu0
    %v1312 = vpop.f32.mrb[0].mxu0
    %v1313 = vpop.f32.mrb[0].mxu0
    %1314 = vdwg.mxu0
    %v1315 = vtanh.pop %v1310
    %1316 = vst.msk [vmem:[#allocation11] sm:$0x3] %vm293, %v1315
    // Predicated region
    $region38: #{tpu_custom_call.1} parent=1 // pred_check
      _
    $region39: #{tpu_custom_call.1} parent=1 // pred_check_branch
      %1318 = sbr.rel (0) target = $region41
    $region40: #{tpu_custom_call.1} parent=1 // pred_region
      %s1320 = ssub.s32 256, 256
      %1321 = vsyncadd [#allocation5], %s1320
      %s1322 = sshll.u32 [#allocation8], 4
      %s1323 = int_to_ptr.vmem [resolvable:$true] %s1322
      %1328 = dma.vmem_to_hbm [thread:$0]  %s1323, 256, %s7, [#allocation5], 32, 32, 2
    $region41: #{tpu_custom_call.1} parent=1 // pred_fallthru
      _
    // Predicated region
    $region42: #{tpu_custom_call.1} parent=1 // pred_check
      _
    $region43: #{tpu_custom_call.1} parent=1 // pred_check_branch
      %1330 = sbr.rel (0) target = $region45
    $region44: #{tpu_custom_call.1} parent=1 // pred_region
      %s1332 = ssub.s32 256, 256
      %1333 = vsyncadd [#allocation10], %s1332
      %s1334 = sshll.u32 [#allocation9], 4
      %s1335 = int_to_ptr.vmem [resolvable:$true] %s1334
      %1340 = dma.vmem_to_hbm [thread:$0]  %s1335, 256, %s8, [#allocation10], 32, 32, 2
    $region45: #{tpu_custom_call.1} parent=1 // pred_fallthru
      _
    // Predicated region
    $region46: #{tpu_custom_call.1} parent=1 // pred_check
      _
    $region47: #{tpu_custom_call.1} parent=1 // pred_check_branch
      %1342 = sbr.rel (0) target = $region49
    $region48: #{tpu_custom_call.1} parent=1 // pred_region
      %s1344 = ssub.s32 32, 32
      %1345 = vsyncadd [#allocation10], %s1344
      %s1347 = sshll.u32 [#allocation11], 4
      %s1348 = int_to_ptr.vmem [resolvable:$true] %s1347
      %1350 = dma.vmem_to_hbm [thread:$0]  %s1348, 32, %s9, [#allocation10]
    $region49: #{tpu_custom_call.1} parent=1 // pred_fallthru
      _
    // Predicated region
    $region50: #{tpu_custom_call.1} parent=1 // pred_check
      _
    $region51: #{tpu_custom_call.1} parent=1 // pred_check_branch
      %1352 = sbr.rel (0) target = $region53
    $region52: #{tpu_custom_call.1} parent=1 // pred_region
      %1353 = dma.done [#allocation5], 256
    $region53: #{tpu_custom_call.1} parent=1 // pred_fallthru
      _
    // Predicated region
    $region54: #{tpu_custom_call.1} parent=1 // pred_check
      _
    $region55: #{tpu_custom_call.1} parent=1 // pred_check_branch
      %1355 = sbr.rel (0) target = $region57
    $region56: #{tpu_custom_call.1} parent=1 // pred_region
      %1356 = dma.done [#allocation10], 256
    $region57: #{tpu_custom_call.1} parent=1 // pred_fallthru
      _
    // Predicated region
    $region58: #{tpu_custom_call.1} parent=1 // pred_check
      _
    $region59: #{tpu_custom_call.1} parent=1 // pred_check_branch
      %1358 = sbr.rel (0) target = $region61
    $region60: #{tpu_custom_call.1} parent=1 // pred_region
      %1359 = dma.done [#allocation10], 32
    $region61: #{tpu_custom_call.1} parent=1 // pred_fallthru
      _
    %1360 = vsyncpa [#allocation4], 1
    %1361 = vsyncpa [#allocation7], 1
    %1362 = vsyncpa [#allocation5], 1
    %1363 = vsyncpa [#allocation10], 1

</llo_original>
